<compile_context>
chip_gen: v7x
topology: tpu7x:2x2x1
jax: 0.10.0
libtpu: 0.0.40
codegen_flags: <defaults>
</compile_context>

<pallas_src>
import math

import jax
import jax.numpy as jnp
from jax.experimental import pallas as pl
from jax.experimental.pallas import tpu as pltpu


def _round_up(v, m):
    return (v + m - 1) // m * m


def _conv3x3_kernel(x_ref, w_ref, b_ref, o_ref, xpad_ref):
    """3x3 same-conv over Bt images; output stored NCHW-flat (lane-dense).

    x_ref:    (Bt, H, W, Cin)        unpadded NHWC input tile
    w_ref:    (Cin, 9*Cout)          tap t = kh*3+kw in columns [t*Cout,(t+1)*Cout)
    b_ref:    (1, Cout)              bias
    o_ref:    (Bt, 1, Cout*H*W)      NCHW-flattened output tile
    xpad_ref: (Bt, Hb, Wp8, Cin) f32 VMEM scratch (zero halo + slack row)
    """
    Bt, H, W, Cin = x_ref.shape
    _, Hb, Wp8, _ = xpad_ref.shape
    Cout = b_ref.shape[1]

    # Zero halo built in VMEM.  Deliberately done every step (not under
    # pl.when(program_id == 0)): scratch is per-core and a v7x core whose
    # first step has program_id != 0 would otherwise read a stale halo.
    # Cost is only ~Bt*Hb*Wp8/8 vector stores per step.
    xpad_ref[...] = jnp.zeros_like(xpad_ref)
    xpad_ref[:, 1:H + 1, 1:W + 1, :] = x_ref[...]

    # Row-major flatten of all Bt padded images; Wp8 % 8 == 0 keeps this
    # merge layout-free (no repack copy).
    M = Bt * Hb * Wp8
    xflat = xpad_ref[...].reshape(M, Cin)

    # ONE MXU matmul for all 9 taps of all Bt images (K=Cin, N=9*Cout).
    acc_all = jnp.dot(xflat, w_ref[...], preferred_element_type=jnp.float32)

    # Output position p = b*Hb*Wp8 + i*Wp8 + j takes tap t=(kh,kw) from
    # acc_all[p + kh*Wp8 + kw, t*Cout:(t+1)*Cout]: only Cout-wide data is
    # shifted/sliced here.  Mo leaves 3*Wp8 slack rows so every shifted slice
    # stays in bounds; all kept outputs live below Mo.
    Mo = M - 3 * Wp8
    acc = acc_all[0:Mo, 0:Cout]
    for t in range(1, 9):
        kh, kw = divmod(t, 3)
        off = kh * Wp8 + kw
        acc = acc + acc_all[off:off + Mo, t * Cout:(t + 1) * Cout]

    # Pad back to M rows (cheap: Cout-wide), return to padded (Bt, Hb, Wp8)
    # coords, keep the HxW interior, add bias, emit NCHW-flat rows.
    acc = jnp.concatenate(
        [acc, jnp.zeros((3 * Wp8, Cout), jnp.float32)], axis=0)
    out_hw = acc.reshape(Bt, Hb, Wp8, Cout)[:, :H, :W, :]
    out_hw = out_hw + b_ref[...].reshape(1, 1, 1, Cout)
    out_chw = jnp.transpose(out_hw.reshape(Bt, H * W, Cout), (0, 2, 1))
    o_ref[...] = out_chw.reshape(Bt, 1, Cout * H * W).astype(o_ref.dtype)


def output_proj(x, weight, bias, *, batch_tile=None):
    """x: (B, L, C) f32, weight: (Cout, Cin, 3, 3) OIHW, bias: (Cout,).

    Returns (B, Cout, H, W) f32, matching PyTorch OutputProj.forward.
    """
    B, L, Cin = x.shape
    H = W = int(math.isqrt(L))
    assert H * W == L, "OutputProj expects L to be a perfect square"
    Cout = weight.shape[0]

    if batch_tile is None:
        # Amortize per-grid-step overhead over several images, but keep >= 2
        # parallel grid steps whenever B >= 2 so both v7x TensorCores get work.
        cap = min(8, max(1, -(-B // 2)))
        batch_tile = max(d for d in range(1, cap + 1) if B % d == 0)
    Bt = batch_tile
    assert B % Bt == 0, "batch_tile must divide B"

    Wp8 = _round_up(W + 2, 8)   # padded row width, multiple of 8
    Hb = H + 3                  # top halo + H rows + bottom halo + 1 slack row

    # (B, L, C) -> (B, H, W, C): pure reshape, no data movement.
    x_nhwc = x.reshape(B, H, W, Cin)
    # PyTorch OIHW -> (Cin, 9*Cout); tap t = kh*3+kw occupies columns
    # [t*Cout, (t+1)*Cout).  Keep f32 to preserve the 1e-4 accuracy budget.
    # TODO(synk): on v6e/v7x feed bf16 activations/weights (f32 accumulation)
    # if the accuracy budget allows -- the kernel is HBM-read-bound.
    w_all = jnp.transpose(weight, (1, 2, 3, 0)).reshape(Cin, 9 * Cout)
    w_all = w_all.astype(jnp.float32)
    b2 = bias.reshape(1, Cout).astype(jnp.float32)

    # TODO(synk): for large H, W add a spatial (row-tile) grid axis with a
    # 2-row halo overlap, sized against v7x's 64 MiB VMEM (the Cout-wide
    # accumulator and xflat are lane-padded to 128), and set vmem_limit_bytes.
    out_flat = pl.pallas_call(
        _conv3x3_kernel,
        out_shape=jax.ShapeDtypeStruct((B, 1, Cout * H * W), jnp.float32),
        grid_spec=pltpu.PrefetchScalarGridSpec(
            num_scalar_prefetch=0,
            grid=(B // Bt,),
            in_specs=[
                pl.BlockSpec((Bt, H, W, Cin), lambda b: (b, 0, 0, 0)),
                pl.BlockSpec((Cin, 9 * Cout), lambda b: (0, 0)),
                pl.BlockSpec((1, Cout), lambda b: (0, 0)),
            ],
            out_specs=pl.BlockSpec((Bt, 1, Cout * H * W), lambda b: (b, 0, 0)),
            scratch_shapes=[pltpu.VMEM((Bt, Hb, Wp8, Cin), jnp.float32)],
        ),
        compiler_params=pltpu.CompilerParams(
            dimension_semantics=("parallel",)),
    )(x_nhwc, w_all, b2)

    # (B, 1, Cout*H*W) -> (B, Cout, H, W): free reshape, no transpose needed.
    return out_flat.reshape(B, Cout, H, W)


def _reference(x, weight, bias):
    """Pure-JAX reference using lax.conv_general_dilated (NCHW)."""
    B, L, Cin = x.shape
    H = W = int(math.isqrt(L))
    x_nchw = jnp.transpose(x, (0, 2, 1)).reshape(B, Cin, H, W)
    out = jax.lax.conv_general_dilated(
        x_nchw, weight, window_strides=(1, 1), padding=((1, 1), (1, 1)),
        dimension_numbers=("NCHW", "OIHW", "NCHW"))
    return out + bias.reshape(1, -1, 1, 1)


if __name__ == "__main__":
    # OutputProj defaults: in_channel=64, out_channel=3, kernel_size=3, stride=1
    B, H, W = 4, 8, 8
    Cin, Cout = 64, 3
    L = H * W

    key = jax.random.PRNGKey(0)
    kx, kw, kb = jax.random.split(key, 3)
    x = jax.random.normal(kx, (B, L, Cin), dtype=jnp.float32)
    fan_in = Cin * 3 * 3
    weight = jax.random.normal(kw, (Cout, Cin, 3, 3), dtype=jnp.float32) / math.sqrt(fan_in)
    bias = jax.random.normal(kb, (Cout,), dtype=jnp.float32) * 0.01

    out = jax.block_until_ready(output_proj(x, weight, bias))
    ref = jax.block_until_ready(_reference(x, weight, bias))

    assert out.shape == (B, Cout, H, W), out.shape
    assert jnp.allclose(out, ref, atol=1e-4, rtol=1e-4), \
        float(jnp.max(jnp.abs(out - ref)))

    print("KERNEL_OK")
</pallas_src>

<mosaic_0001>
module attributes {stable_mosaic.version = 11 : i64} {
  func.func @_conv3x3_kernel(%arg0: i32, %arg1: memref<2x8x8x64xf32, #tpu.memory_space<vmem>>, %arg2: memref<64x27xf32, #tpu.memory_space<vmem>>, %arg3: memref<1x3xf32, #tpu.memory_space<vmem>>, %arg4: memref<2x1x192xf32, #tpu.memory_space<vmem>>, %arg5: memref<2x11x16x64xf32, #tpu.memory_space<vmem>>) attributes {dimension_semantics = [#tpu.dimension_semantics<parallel>], iteration_bounds = array<i64: 2>, scalar_prefetch = 0 : i64, scratch_operands = 1 : i64, tpu.core_type = #tpu.core_type<tc>, window_params = [{transform_indices = @transform_0, window_bounds = array<i64: 2, 8, 8, 64>}, {pipeline_mode = #tpu.pipeline_mode<synchronous>, transform_indices = @transform_1, window_bounds = array<i64: 64, 27>}, {pipeline_mode = #tpu.pipeline_mode<synchronous>, transform_indices = @transform_2, window_bounds = array<i64: 1, 3>}, {transform_indices = @transform_3, window_bounds = array<i64: 2, 1, 192>}]} {
    %cst = arith.constant 0.000000e+00 : f32
    %0 = vector.broadcast %cst : f32 to vector<2x11x16x64xf32>
    %c0 = arith.constant 0 : index
    %c0_0 = arith.constant 0 : index
    %c0_1 = arith.constant 0 : index
    %c0_2 = arith.constant 0 : index
    %1 = vector.load %arg5[%c0, %c0_0, %c0_1, %c0_2] : memref<2x11x16x64xf32, #tpu.memory_space<vmem>>, vector<2x11x16x64xf32>
    tpu.vector_store %arg5[%c0, %c0_0, %c0_1, %c0_2], %0 {strides = array<i32>} : memref<2x11x16x64xf32, #tpu.memory_space<vmem>>, vector<2x11x16x64xf32>,
    %c0_3 = arith.constant 0 : index
    %c0_4 = arith.constant 0 : index
    %c0_5 = arith.constant 0 : index
    %c0_6 = arith.constant 0 : index
    %2 = vector.load %arg1[%c0_3, %c0_4, %c0_5, %c0_6] : memref<2x8x8x64xf32, #tpu.memory_space<vmem>>, vector<2x8x8x64xf32>
    %c0_7 = arith.constant 0 : index
    %c1 = arith.constant 1 : index
    %c1_8 = arith.constant 1 : index
    %c0_9 = arith.constant 0 : index
    %3 = vector.load %arg5[%c0_7, %c1, %c1_8, %c0_9] : memref<2x11x16x64xf32, #tpu.memory_space<vmem>>, vector<2x8x8x64xf32>
    tpu.vector_store %arg5[%c0_7, %c1, %c1_8, %c0_9], %2 {strides = array<i32>} : memref<2x11x16x64xf32, #tpu.memory_space<vmem>>, vector<2x8x8x64xf32>,
    %c0_10 = arith.constant 0 : index
    %c0_11 = arith.constant 0 : index
    %c0_12 = arith.constant 0 : index
    %c0_13 = arith.constant 0 : index
    %4 = vector.load %arg5[%c0_10, %c0_11, %c0_12, %c0_13] : memref<2x11x16x64xf32, #tpu.memory_space<vmem>>, vector<2x11x16x64xf32>
    %5 = vector.shape_cast %4 : vector<2x11x16x64xf32> to vector<352x64xf32>
    %c0_14 = arith.constant 0 : index
    %c0_15 = arith.constant 0 : index
    %6 = vector.load %arg2[%c0_14, %c0_15] : memref<64x27xf32, #tpu.memory_space<vmem>>, vector<64x27xf32>
    %cst_16 = arith.constant dense<0.000000e+00> : vector<352x27xf32>
    %7 = tpu.matmul %5, %6, %cst_16 {dimension_numbers = #tpu.dot_dimension_numbers<[1], [0], [0], [1], [0, 0, 1, 1], [], []>} : vector<352x64xf32>, vector<64x27xf32>, vector<352x27xf32> -> vector<352x27xf32>
    %8 = vector.extract_strided_slice %7 {offsets = [0, 0], sizes = [304, 3], strides = [1, 1]} : vector<352x27xf32> to vector<304x3xf32>
    %9 = vector.extract_strided_slice %7 {offsets = [1, 3], sizes = [304, 3], strides = [1, 1]} : vector<352x27xf32> to vector<304x3xf32>
    %10 = arith.addf %8, %9 : vector<304x3xf32>
    %11 = vector.extract_strided_slice %7 {offsets = [2, 6], sizes = [304, 3], strides = [1, 1]} : vector<352x27xf32> to vector<304x3xf32>
    %12 = arith.addf %10, %11 : vector<304x3xf32>
    %13 = vector.extract_strided_slice %7 {offsets = [16, 9], sizes = [304, 3], strides = [1, 1]} : vector<352x27xf32> to vector<304x3xf32>
    %14 = arith.addf %12, %13 : vector<304x3xf32>
    %15 = vector.extract_strided_slice %7 {offsets = [17, 12], sizes = [304, 3], strides = [1, 1]} : vector<352x27xf32> to vector<304x3xf32>
    %16 = arith.addf %14, %15 : vector<304x3xf32>
    %17 = vector.extract_strided_slice %7 {offsets = [18, 15], sizes = [304, 3], strides = [1, 1]} : vector<352x27xf32> to vector<304x3xf32>
    %18 = arith.addf %16, %17 : vector<304x3xf32>
    %19 = vector.extract_strided_slice %7 {offsets = [32, 18], sizes = [304, 3], strides = [1, 1]} : vector<352x27xf32> to vector<304x3xf32>
    %20 = arith.addf %18, %19 : vector<304x3xf32>
    %21 = vector.extract_strided_slice %7 {offsets = [33, 21], sizes = [304, 3], strides = [1, 1]} : vector<352x27xf32> to vector<304x3xf32>
    %22 = arith.addf %20, %21 : vector<304x3xf32>
    %23 = vector.extract_strided_slice %7 {offsets = [34, 24], sizes = [304, 3], strides = [1, 1]} : vector<352x27xf32> to vector<304x3xf32>
    %24 = arith.addf %22, %23 : vector<304x3xf32>
    %cst_17 = arith.constant 0.000000e+00 : f32
    %25 = vector.broadcast %cst_17 : f32 to vector<48x3xf32>
    %26 = tpu.concatenate %24, %25 in 0 : vector<304x3xf32>, vector<48x3xf32> -> vector<352x3xf32>
    %27 = vector.shape_cast %26 : vector<352x3xf32> to vector<2x11x16x3xf32>
    %28 = vector.extract_strided_slice %27 {offsets = [0, 0, 0, 0], sizes = [2, 8, 8, 3], strides = [1, 1, 1, 1]} : vector<2x11x16x3xf32> to vector<2x8x8x3xf32>
    %c0_18 = arith.constant 0 : index
    %c0_19 = arith.constant 0 : index
    %29 = vector.load %arg3[%c0_18, %c0_19] : memref<1x3xf32, #tpu.memory_space<vmem>>, vector<1x3xf32>
    %30 = vector.shape_cast %29 : vector<1x3xf32> to vector<1x1x1x3xf32>
    %31 = vector.broadcast %30 : vector<1x1x1x3xf32> to vector<2x8x8x3xf32>
    %32 = arith.addf %28, %31 : vector<2x8x8x3xf32>
    %33 = vector.shape_cast %32 : vector<2x8x8x3xf32> to vector<2x64x3xf32>
    %34 = tpu.transpose %33, [0, 2, 1] : vector<2x64x3xf32> -> vector<2x3x64xf32>
    %35 = vector.shape_cast %34 : vector<2x3x64xf32> to vector<2x1x192xf32>
    %c0_20 = arith.constant 0 : index
    %c0_21 = arith.constant 0 : index
    %c0_22 = arith.constant 0 : index
    %36 = vector.load %arg4[%c0_20, %c0_21, %c0_22] : memref<2x1x192xf32, #tpu.memory_space<vmem>>, vector<2x1x192xf32>
    tpu.vector_store %arg4[%c0_20, %c0_21, %c0_22], %35 {strides = array<i32>} : memref<2x1x192xf32, #tpu.memory_space<vmem>>, vector<2x1x192xf32>,
    return
  }
  func.func @transform_0(%arg0: i32) -> (i32, i32, i32, i32) {
    %c0_i32 = arith.constant 0 : i32
    %c0_i32_0 = arith.constant 0 : i32
    %c0_i32_1 = arith.constant 0 : i32
    %c0_i32_2 = arith.constant 0 : i32
    return %arg0, %c0_i32, %c0_i32_0, %c0_i32_1 : i32, i32, i32, i32
  }
  func.func @transform_1(%arg0: i32) -> (i32, i32) {
    %c0_i32 = arith.constant 0 : i32
    %c0_i32_0 = arith.constant 0 : i32
    %c0_i32_1 = arith.constant 0 : i32
    return %c0_i32, %c0_i32_0 : i32, i32
  }
  func.func @transform_2(%arg0: i32) -> (i32, i32) {
    %c0_i32 = arith.constant 0 : i32
    %c0_i32_0 = arith.constant 0 : i32
    %c0_i32_1 = arith.constant 0 : i32
    return %c0_i32, %c0_i32_0 : i32, i32
  }
  func.func @transform_3(%arg0: i32) -> (i32, i32, i32) {
    %c0_i32 = arith.constant 0 : i32
    %c0_i32_0 = arith.constant 0 : i32
    %c0_i32_1 = arith.constant 0 : i32
    return %arg0, %c0_i32, %c0_i32_0 : i32, i32, i32
  }
}

</mosaic_0001>

<llo_original>
// kernel: tpu_custom_call.1
$region0: #{tpu_custom_call.1}
  #allocation0 [shape = 'u32[]', space=smem, size = 0x4, offset = 0x4, fixed_abs, tag = 'smem constant byte address 0x4 - core index']
  #allocation1 [shape = 'u32[144,128]{1,0:T(1,128)}', space=vmem, size = 0x12000, scoped, tag = 'internal scratch']
  #allocation2 [shape = 'f32[2,11,16,64]{3,2,1,0:T(8,128)}', space=vmem, size = 0x2c000, scoped, tag = 'scratch operand']
  %s0 = inlined_call_operand.hbm [shape: f32[4,8,8,64], index: 0, kind: input, shape index: {}]
  %s1 = inlined_call_operand.vmem [shape: f32[64,27], index: 1, kind: input, shape index: {}]
  %s2 = inlined_call_operand.vmem [shape: f32[1,3], index: 2, kind: input, shape index: {}]
  %s3 = inlined_call_operand.hbm [shape: f32[4,1,192], index: 3, kind: output, shape index: {}]
  %s4 = sld [smem:[#allocation0]]
  $region49: #{tpu_custom_call.1} parent=0
    _
  %s6 = ssub.s32 1, %s4
  %s7 = scalar_select 0, %s6, %s4
  $region1: #{tpu_custom_call.1} parent=0
    #allocation3 [shape = 'u8[131072]{0}', space=vmem, size = 0x20000, scoped, tag = 'input window, operand 0']
    #allocation4 [shape = 's32[2]{0}', space=sflag, size = 0x8, scoped, tag = 'scoped memory for tpu_custom_call.1']
    #allocation5 [shape = 's32[2]{0}', space=sflag, size = 0x8, scoped, tag = 'scoped memory for tpu_custom_call.1']
    #allocation6 [shape = 'u8[4096]{0}', space=vmem, size = 0x1000, scoped, tag = 'output window, operand 0']
    %8 = vsyncpa [#allocation4], 0
    %s9 = scalar_lea.sflag [#allocation4], 1
    %10 = vsyncpa %s9, 0
    %11 = vsyncpa [#allocation5], 0
    %s12 = scalar_lea.sflag [#allocation5], 1
    %13 = vsyncpa %s12, 0
    loop: start=0, step=1, limit=4
    $region2: #{tpu_custom_call.1} parent=1 // loop_pre_header
      _
    $region3: #{tpu_custom_call.1} parent=1 // loop_header
      %s15 = sphi 0, %s19
      %p16 = scmp.ge.s32.totalorder %s15, 4
      %s25 = sphi 0, %s27
      %s28 = sphi 0, %s25
      %s29 = sphi 0, %s28
      %s45 = sphi 0, %s29
      %s49 = sphi 0, %s49
      %s51 = sphi 0, %s49
      %s52 = sphi 0, %s51
      %s66 = sphi 0, %s52
      %s70 = sphi 0, %s70
      %s72 = sphi 0, %s70
      %s73 = sphi 0, %s72
      %s87 = sphi 0, %s73
      %s93 = sphi 0, %s95
      %s96 = sphi 0, %s93
      %s97 = sphi 0, %s96
      %s113 = sphi 0, %s97
    $region4: #{tpu_custom_call.1} parent=1 // loop_header_branch
      %18 = sbr.rel (%p16) target = $region8
    $region5: #{tpu_custom_call.1} parent=1 // loop_body
      %s20 = ssub.s32 %s15, 1
      %s21 = ssub.s32 %s15, 2
      %s22 = sadd.s32 %s15, 1
      %s23 = ssub.s32 %s15, %s22
      %p24 = scmp.eq.s32.totalorder %s23, 0
      %s26 = sadd.s32 %s25, 1
      %s27 = scalar_select %p24, %s25, %s26
      %p30 = pneg %p24
      %p31 = scmp.eq.s32.totalorder %s15, 1
      %p32 = por %p30, %p31
      %p33 = scmp.ne.s32.totalorder %s25, %s28
      %p34 = scmp.eq.s32.totalorder %s15, 0
      %p35 = por %p33, %p34
      %p36 = scmp.ne.s32.totalorder %s25, %s28
      %p37 = scmp.eq.s32.totalorder %s20, 1
      %p38 = por %p36, %p37
      %p39 = scmp.ne.s32.totalorder %s28, %s29
      %p40 = scmp.eq.s32.totalorder %s20, 0
      %p41 = por %p39, %p40
      %p42 = scmp.ne.s32.totalorder %s28, %s29
      %p43 = scmp.eq.s32.totalorder %s21, 1
      %p44 = por %p42, %p43
      %p46 = scmp.ne.s32.totalorder %s29, %s45
      %p47 = scmp.eq.s32.totalorder %s21, 0
      %p48 = por %p46, %p47
      %s50 = sadd.s32 %s49, 1
      %p53 = scmp.eq.s32.totalorder %s15, 1
      %p54 = scmp.ne.s32.totalorder %s49, %s51
      %p55 = scmp.eq.s32.totalorder %s15, 0
      %p56 = por %p54, %p55
      %p57 = scmp.ne.s32.totalorder %s49, %s51
      %p58 = scmp.eq.s32.totalorder %s20, 1
      %p59 = por %p57, %p58
      %p60 = scmp.ne.s32.totalorder %s51, %s52
      %p61 = scmp.eq.s32.totalorder %s20, 0
      %p62 = por %p60, %p61
      %p63 = scmp.ne.s32.totalorder %s51, %s52
      %p64 = scmp.eq.s32.totalorder %s21, 1
      %p65 = por %p63, %p64
      %p67 = scmp.ne.s32.totalorder %s52, %s66
      %p68 = scmp.eq.s32.totalorder %s21, 0
      %p69 = por %p67, %p68
      %s71 = sadd.s32 %s70, 1
      %p74 = scmp.eq.s32.totalorder %s15, 1
      %p75 = scmp.ne.s32.totalorder %s70, %s72
      %p76 = scmp.eq.s32.totalorder %s15, 0
      %p77 = por %p75, %p76
      %p78 = scmp.ne.s32.totalorder %s70, %s72
      %p79 = scmp.eq.s32.totalorder %s20, 1
      %p80 = por %p78, %p79
      %p81 = scmp.ne.s32.totalorder %s72, %s73
      %p82 = scmp.eq.s32.totalorder %s20, 0
      %p83 = por %p81, %p82
      %p84 = scmp.ne.s32.totalorder %s72, %s73
      %p85 = scmp.eq.s32.totalorder %s21, 1
      %p86 = por %p84, %p85
      %p88 = scmp.ne.s32.totalorder %s73, %s87
      %p89 = scmp.eq.s32.totalorder %s21, 0
      %p90 = por %p88, %p89
      %s91 = ssub.s32 %s15, %s22
      %p92 = scmp.eq.s32.totalorder %s91, 0
      %s94 = sadd.s32 %s93, 1
      %s95 = scalar_select %p92, %s93, %s94
      %p98 = pneg %p92
      %p99 = scmp.eq.s32.totalorder %s15, 1
      %p100 = por %p98, %p99
      %p101 = scmp.ne.s32.totalorder %s93, %s96
      %p102 = scmp.eq.s32.totalorder %s15, 0
      %p103 = por %p101, %p102
      %p104 = scmp.ne.s32.totalorder %s93, %s96
      %p105 = scmp.eq.s32.totalorder %s20, 1
      %p106 = por %p104, %p105
      %p107 = scmp.ne.s32.totalorder %s96, %s97
      %p108 = scmp.eq.s32.totalorder %s20, 0
      %p109 = por %p107, %p108
      %p110 = scmp.ne.s32.totalorder %s96, %s97
      %p111 = scmp.eq.s32.totalorder %s21, 1
      %p112 = por %p110, %p111
      %p114 = scmp.ne.s32.totalorder %s97, %s113
      %p115 = scmp.eq.s32.totalorder %s21, 0
      %p116 = por %p114, %p115
      %p117 = scmp.le.s32.totalorder 1, %s15
      %p118 = scmp.lt.s32.totalorder %s15, 3
      %p119 = pnand %p117, %p118
      %p120 = pneg %p119
      // Predicated region
      $region9: #{tpu_custom_call.1} parent=5 // pred_check
        _
      $region10: #{tpu_custom_call.1} parent=5 // pred_check_branch
        %122 = sbr.rel (%p119) target = $region12
      $region11: #{tpu_custom_call.1} parent=5 // pred_region
        %s123 = ssub.s32 %s15, 1
        // Predicated region
        $region13: #{tpu_custom_call.1} parent=11 // pred_check
          %p124 = pneg %p62
        $region14: #{tpu_custom_call.1} parent=11 // pred_check_branch
          %126 = sbr.rel (%p124) target = $region16
        $region15: #{tpu_custom_call.1} parent=11 // pred_region
          _
        $region16: #{tpu_custom_call.1} parent=11 // pred_fallthru
          _
        // Predicated region
        $region17: #{tpu_custom_call.1} parent=11 // pred_check
          %p127 = pneg %p83
        $region18: #{tpu_custom_call.1} parent=11 // pred_check_branch
          %129 = sbr.rel (%p127) target = $region20
        $region19: #{tpu_custom_call.1} parent=11 // pred_region
          _
        $region20: #{tpu_custom_call.1} parent=11 // pred_fallthru
          _
      $region12: #{tpu_custom_call.1} parent=5 // pred_fallthru
        _
      %p130 = scmp.lt.s32.totalorder %s15, 2
      // Predicated region
      $region21: #{tpu_custom_call.1} parent=5 // pred_check
        %p131 = pneg %p130
      $region22: #{tpu_custom_call.1} parent=5 // pred_check_branch
        %133 = sbr.rel (%p131) target = $region24
      $region23: #{tpu_custom_call.1} parent=5 // pred_region
        // Predicated region
        $region25: #{tpu_custom_call.1} parent=23 // pred_check
          %p134 = pneg %p35
        $region26: #{tpu_custom_call.1} parent=23 // pred_check_branch
          %136 = sbr.rel (%p134) target = $region28
        $region27: #{tpu_custom_call.1} parent=23 // pred_region
          %s137 = sand.u32 %s25, 1
          %s138 = scalar_lea.sflag [#allocation4], %s137
          %s139 = sand.u32 %s25, 1
          %s140 = smul.addr %s139, 128
          %s141 = scalar_lea.vmem [#allocation3], %s140
          %s142 = smul.u32 2, %s15
          %s144 = ssub.s32 2048, 2048
          %145 = vsyncadd %s138, %s144
          %s146 = smul.addr %s142, 8
          %s147 = smul.addr %s146, 128
          %s148 = scalar_lea.hbm %s0, %s147
          %s149 = sshll.u32 %s141, 4
          %s150 = int_to_ptr.vmem [resolvable:$true] %s149
          %155 = dma.hbm_to_vmem [thread:$0]  %s148, 2048, %s150, %s138, 128, 128, 8
        $region28: #{tpu_custom_call.1} parent=23 // pred_fallthru
          _
      $region24: #{tpu_custom_call.1} parent=5 // pred_fallthru
        _
      %p156 = scmp.le.s32.totalorder 1, %s15
      %p157 = scmp.lt.s32.totalorder %s15, 3
      %p158 = pnand %p156, %p157
      %p159 = pneg %p158
      // Predicated region
      $region29: #{tpu_custom_call.1} parent=5 // pred_check
        _
      $region30: #{tpu_custom_call.1} parent=5 // pred_check_branch
        %161 = sbr.rel (%p158) target = $region32
      $region31: #{tpu_custom_call.1} parent=5 // pred_region
        %s162 = ssub.s32 %s15, 1
        %s163 = sand.u32 %s28, 1
        %s164 = scalar_lea.sflag [#allocation4], %s163
        %s165 = sand.u32 %s28, 1
        %s166 = smul.addr %s165, 128
        %s167 = scalar_lea.vmem [#allocation3], %s166
        // Predicated region
        $region33: #{tpu_custom_call.1} parent=31 // pred_check
          %p168 = pneg %p41
        $region34: #{tpu_custom_call.1} parent=31 // pred_check_branch
          %170 = sbr.rel (%p168) target = $region36
        $region35: #{tpu_custom_call.1} parent=31 // pred_region
          %171 = dma.done %s164, 2048
        $region36: #{tpu_custom_call.1} parent=31 // pred_fallthru
          _
        %s172 = sand.u32 %s28, 1
        %s173 = scalar_lea.sflag [#allocation4], %s172
        %s174 = sand.u32 %s28, 1
        %s175 = smul.addr %s174, 128
        %s176 = scalar_lea.vmem [#allocation3], %s175
        %p177 = pneg %p41
        %p178 = pneg %p38
        %p179 = pneg %p62
        %p180 = pneg %p59
        %p181 = pneg %p83
        %p182 = pneg %p80
        %p183 = pneg %p109
        %p184 = pneg %p106
        %s185 = sand.u32 %s96, 1
        %s186 = scalar_lea.sflag [#allocation5], %s185
        %s187 = sand.u32 %s96, 1
        %s188 = smul.addr %s187, 4
        %s189 = scalar_lea.vmem [#allocation6], %s188
        %s190 = smul.u32 2, %s20
        %s191 = smul.u32 2, %s20
        %vm192 = vcmask 523264
        %193 = vst.msk [vmem:[#allocation2] sm:$0xff] %vm192, 0.0
        %194 = vst.msk [vmem:[#allocation2 + $0x8] sm:$0xff] %vm192, 0.0
        %195 = vst.msk [vmem:[#allocation2 + $0x10] sm:$0xff] %vm192, 0.0
        %196 = vst.msk [vmem:[#allocation2 + $0x18] sm:$0xff] %vm192, 0.0
        %197 = vst.msk [vmem:[#allocation2 + $0x20] sm:$0xff] %vm192, 0.0
        %198 = vst.msk [vmem:[#allocation2 + $0x28] sm:$0xff] %vm192, 0.0
        %199 = vst.msk [vmem:[#allocation2 + $0x30] sm:$0xff] %vm192, 0.0
        %200 = vst.msk [vmem:[#allocation2 + $0x38] sm:$0xff] %vm192, 0.0
        %201 = vst.msk [vmem:[#allocation2 + $0x40] sm:$0xff] %vm192, 0.0
        %202 = vst.msk [vmem:[#allocation2 + $0x48] sm:$0xff] %vm192, 0.0
        %203 = vst.msk [vmem:[#allocation2 + $0x50] sm:$0xff] %vm192, 0.0
        %204 = vst.msk [vmem:[#allocation2 + $0x58] sm:$0xff] %vm192, 0.0
        %205 = vst.msk [vmem:[#allocation2 + $0x60] sm:$0xff] %vm192, 0.0
        %206 = vst.msk [vmem:[#allocation2 + $0x68] sm:$0xff] %vm192, 0.0
        %207 = vst.msk [vmem:[#allocation2 + $0x70] sm:$0xff] %vm192, 0.0
        %208 = vst.msk [vmem:[#allocation2 + $0x78] sm:$0xff] %vm192, 0.0
        %209 = vst.msk [vmem:[#allocation2 + $0x80] sm:$0xff] %vm192, 0.0
        %210 = vst.msk [vmem:[#allocation2 + $0x88] sm:$0xff] %vm192, 0.0
        %211 = vst.msk [vmem:[#allocation2 + $0x90] sm:$0xff] %vm192, 0.0
        %212 = vst.msk [vmem:[#allocation2 + $0x98] sm:$0xff] %vm192, 0.0
        %213 = vst.msk [vmem:[#allocation2 + $0xa0] sm:$0xff] %vm192, 0.0
        %214 = vst.msk [vmem:[#allocation2 + $0xa8] sm:$0xff] %vm192, 0.0
        %215 = vst.msk [vmem:[#allocation2 + $0xb0] sm:$0xff] %vm192, 0.0
        %216 = vst.msk [vmem:[#allocation2 + $0xb8] sm:$0xff] %vm192, 0.0
        %217 = vst.msk [vmem:[#allocation2 + $0xc0] sm:$0xff] %vm192, 0.0
        %218 = vst.msk [vmem:[#allocation2 + $0xc8] sm:$0xff] %vm192, 0.0
        %219 = vst.msk [vmem:[#allocation2 + $0xd0] sm:$0xff] %vm192, 0.0
        %220 = vst.msk [vmem:[#allocation2 + $0xd8] sm:$0xff] %vm192, 0.0
        %221 = vst.msk [vmem:[#allocation2 + $0xe0] sm:$0xff] %vm192, 0.0
        %222 = vst.msk [vmem:[#allocation2 + $0xe8] sm:$0xff] %vm192, 0.0
        %223 = vst.msk [vmem:[#allocation2 + $0xf0] sm:$0xff] %vm192, 0.0
        %224 = vst.msk [vmem:[#allocation2 + $0xf8] sm:$0xff] %vm192, 0.0
        %225 = vst.msk [vmem:[#allocation2 + $0x100] sm:$0xff] %vm192, 0.0
        %226 = vst.msk [vmem:[#allocation2 + $0x108] sm:$0xff] %vm192, 0.0
        %227 = vst.msk [vmem:[#allocation2 + $0x110] sm:$0xff] %vm192, 0.0
        %228 = vst.msk [vmem:[#allocation2 + $0x118] sm:$0xff] %vm192, 0.0
        %229 = vst.msk [vmem:[#allocation2 + $0x120] sm:$0xff] %vm192, 0.0
        %230 = vst.msk [vmem:[#allocation2 + $0x128] sm:$0xff] %vm192, 0.0
        %231 = vst.msk [vmem:[#allocation2 + $0x130] sm:$0xff] %vm192, 0.0
        %232 = vst.msk [vmem:[#allocation2 + $0x138] sm:$0xff] %vm192, 0.0
        %233 = vst.msk [vmem:[#allocation2 + $0x140] sm:$0xff] %vm192, 0.0
        %234 = vst.msk [vmem:[#allocation2 + $0x148] sm:$0xff] %vm192, 0.0
        %235 = vst.msk [vmem:[#allocation2 + $0x150] sm:$0xff] %vm192, 0.0
        %236 = vst.msk [vmem:[#allocation2 + $0x158] sm:$0xff] %vm192, 0.0
        %v237 = vld [vmem:[%s167] sm:$0xff]
        %v238 = vld [vmem:[%s167 + $0x8] sm:$0xff]
        %v239 = vld [vmem:[%s167 + $0x10] sm:$0xff]
        %v240 = vld [vmem:[%s167 + $0x18] sm:$0xff]
        %v241 = vld [vmem:[%s167 + $0x20] sm:$0xff]
        %v242 = vld [vmem:[%s167 + $0x28] sm:$0xff]
        %v243 = vld [vmem:[%s167 + $0x30] sm:$0xff]
        %v244 = vld [vmem:[%s167 + $0x38] sm:$0xff]
        %v245 = vld [vmem:[%s167 + $0x40] sm:$0xff]
        %v246 = vld [vmem:[%s167 + $0x48] sm:$0xff]
        %v247 = vld [vmem:[%s167 + $0x50] sm:$0xff]
        %v248 = vld [vmem:[%s167 + $0x58] sm:$0xff]
        %v249 = vld [vmem:[%s167 + $0x60] sm:$0xff]
        %v250 = vld [vmem:[%s167 + $0x68] sm:$0xff]
        %v251 = vld [vmem:[%s167 + $0x70] sm:$0xff]
        %v252 = vld [vmem:[%s167 + $0x78] sm:$0xff]
        %s253 = scalar_lea.vmem [#allocation2], 16
        %254 = vst.msk [vmem:[%s253 + $0x1] sm:$0xff] %vm192, %v237
        %255 = vst.msk [vmem:[%s253 + $0x11] sm:$0xff] %vm192, %v238
        %256 = vst.msk [vmem:[%s253 + $0x21] sm:$0xff] %vm192, %v239
        %257 = vst.msk [vmem:[%s253 + $0x31] sm:$0xff] %vm192, %v240
        %258 = vst.msk [vmem:[%s253 + $0x41] sm:$0xff] %vm192, %v241
        %259 = vst.msk [vmem:[%s253 + $0x51] sm:$0xff] %vm192, %v242
        %260 = vst.msk [vmem:[%s253 + $0x61] sm:$0xff] %vm192, %v243
        %261 = vst.msk [vmem:[%s253 + $0x71] sm:$0xff] %vm192, %v244
        %262 = vst.msk [vmem:[%s253 + $0xb1] sm:$0xff] %vm192, %v245
        %263 = vst.msk [vmem:[%s253 + $0xc1] sm:$0xff] %vm192, %v246
        %264 = vst.msk [vmem:[%s253 + $0xd1] sm:$0xff] %vm192, %v247
        %265 = vst.msk [vmem:[%s253 + $0xe1] sm:$0xff] %vm192, %v248
        %266 = vst.msk [vmem:[%s253 + $0xf1] sm:$0xff] %vm192, %v249
        %267 = vst.msk [vmem:[%s253 + $0x101] sm:$0xff] %vm192, %v250
        %268 = vst.msk [vmem:[%s253 + $0x111] sm:$0xff] %vm192, %v251
        %269 = vst.msk [vmem:[%s253 + $0x121] sm:$0xff] %vm192, %v252
        %v270 = vld [vmem:[#allocation2] sm:$0xff]
        %v271 = vld [vmem:[#allocation2 + $0x8] sm:$0xff]
        %v272 = vld [vmem:[#allocation2 + $0x10] sm:$0xff]
        %v273 = vld [vmem:[#allocation2 + $0x18] sm:$0xff]
        %v274 = vld [vmem:[#allocation2 + $0x20] sm:$0xff]
        %v275 = vld [vmem:[#allocation2 + $0x28] sm:$0xff]
        %v276 = vld [vmem:[#allocation2 + $0x30] sm:$0xff]
        %v277 = vld [vmem:[#allocation2 + $0x38] sm:$0xff]
        %v278 = vld [vmem:[#allocation2 + $0x40] sm:$0xff]
        %v279 = vld [vmem:[#allocation2 + $0x48] sm:$0xff]
        %v280 = vld [vmem:[#allocation2 + $0x50] sm:$0xff]
        %v281 = vld [vmem:[#allocation2 + $0x58] sm:$0xff]
        %v282 = vld [vmem:[#allocation2 + $0x60] sm:$0xff]
        %v283 = vld [vmem:[#allocation2 + $0x68] sm:$0xff]
        %v284 = vld [vmem:[#allocation2 + $0x70] sm:$0xff]
        %v285 = vld [vmem:[#allocation2 + $0x78] sm:$0xff]
        %v286 = vld [vmem:[#allocation2 + $0x80] sm:$0xff]
        %v287 = vld [vmem:[#allocation2 + $0x88] sm:$0xff]
        %v288 = vld [vmem:[#allocation2 + $0x90] sm:$0xff]
        %v289 = vld [vmem:[#allocation2 + $0x98] sm:$0xff]
        %v290 = vld [vmem:[#allocation2 + $0xa0] sm:$0xff]
        %v291 = vld [vmem:[#allocation2 + $0xa8] sm:$0xff]
        %v292 = vld [vmem:[#allocation2 + $0xb0] sm:$0xff]
        %v293 = vld [vmem:[#allocation2 + $0xb8] sm:$0xff]
        %v294 = vld [vmem:[#allocation2 + $0xc0] sm:$0xff]
        %v295 = vld [vmem:[#allocation2 + $0xc8] sm:$0xff]
        %v296 = vld [vmem:[#allocation2 + $0xd0] sm:$0xff]
        %v297 = vld [vmem:[#allocation2 + $0xd8] sm:$0xff]
        %v298 = vld [vmem:[#allocation2 + $0xe0] sm:$0xff]
        %v299 = vld [vmem:[#allocation2 + $0xe8] sm:$0xff]
        %v300 = vld [vmem:[#allocation2 + $0xf0] sm:$0xff]
        %v301 = vld [vmem:[#allocation2 + $0xf8] sm:$0xff]
        %v302 = vld [vmem:[#allocation2 + $0x100] sm:$0xff]
        %v303 = vld [vmem:[#allocation2 + $0x108] sm:$0xff]
        %v304 = vld [vmem:[#allocation2 + $0x110] sm:$0xff]
        %v305 = vld [vmem:[#allocation2 + $0x118] sm:$0xff]
        %v306 = vld [vmem:[#allocation2 + $0x120] sm:$0xff]
        %v307 = vld [vmem:[#allocation2 + $0x128] sm:$0xff]
        %v308 = vld [vmem:[#allocation2 + $0x130] sm:$0xff]
        %v309 = vld [vmem:[#allocation2 + $0x138] sm:$0xff]
        %v310 = vld [vmem:[#allocation2 + $0x140] sm:$0xff]
        %v311 = vld [vmem:[#allocation2 + $0x148] sm:$0xff]
        %v312 = vld [vmem:[#allocation2 + $0x150] sm:$0xff]
        %v313 = vld [vmem:[#allocation2 + $0x158] sm:$0xff]
        %v314 = vld [vmem:[%s1] sm:$0xff]
        %v315 = vld [vmem:[%s1 + $0x8] sm:$0xff]
        %v316 = vld [vmem:[%s1 + $0x10] sm:$0xff]
        %v317 = vld [vmem:[%s1 + $0x18] sm:$0xff]
        %v318 = vld [vmem:[%s1 + $0x20] sm:$0xff]
        %v319 = vld [vmem:[%s1 + $0x28] sm:$0xff]
        %v320 = vld [vmem:[%s1 + $0x30] sm:$0xff]
        %v321 = vld [vmem:[%s1 + $0x38] sm:$0xff]
        %v323 = vsel %vm192, %v270, 0
        %v326 = vsel %vm192, %v271, 0
        %v329 = vsel %vm192, %v272, 0
        %v332 = vsel %vm192, %v273, 0
        %v335 = vsel %vm192, %v274, 0
        %v338 = vsel %vm192, %v275, 0
        %v341 = vsel %vm192, %v276, 0
        %v344 = vsel %vm192, %v277, 0
        %v347 = vsel %vm192, %v278, 0
        %v350 = vsel %vm192, %v279, 0
        %v353 = vsel %vm192, %v280, 0
        %v356 = vsel %vm192, %v281, 0
        %v359 = vsel %vm192, %v282, 0
        %v362 = vsel %vm192, %v283, 0
        %v365 = vsel %vm192, %v284, 0
        %v368 = vsel %vm192, %v285, 0
        %v371 = vsel %vm192, %v286, 0
        %v374 = vsel %vm192, %v287, 0
        %v377 = vsel %vm192, %v288, 0
        %v380 = vsel %vm192, %v289, 0
        %v383 = vsel %vm192, %v290, 0
        %v386 = vsel %vm192, %v291, 0
        %v389 = vsel %vm192, %v292, 0
        %v392 = vsel %vm192, %v293, 0
        %v395 = vsel %vm192, %v294, 0
        %v398 = vsel %vm192, %v295, 0
        %v401 = vsel %vm192, %v296, 0
        %v404 = vsel %vm192, %v297, 0
        %v407 = vsel %vm192, %v298, 0
        %v410 = vsel %vm192, %v299, 0
        %v413 = vsel %vm192, %v300, 0
        %v416 = vsel %vm192, %v301, 0
        %v419 = vsel %vm192, %v302, 0
        %v422 = vsel %vm192, %v303, 0
        %v425 = vsel %vm192, %v304, 0
        %v428 = vsel %vm192, %v305, 0
        %v431 = vsel %vm192, %v306, 0
        %v434 = vsel %vm192, %v307, 0
        %v437 = vsel %vm192, %v308, 0
        %v440 = vsel %vm192, %v309, 0
        %v443 = vsel %vm192, %v310, 0
        %v446 = vsel %vm192, %v311, 0
        %v449 = vsel %vm192, %v312, 0
        %v452 = vsel %vm192, %v313, 0
        %454 = vmatprep.subr.mxu0 0.0
        %455 = vmatpush1.msra.mxu0 %v314
        %456 = vmatprep.subr.mxu0 0.0
        %457 = vmatpush1.msra.mxu0 %v315
        %458 = vmatprep.subr.mxu0 0.0
        %459 = vmatpush1.msra.mxu0 %v316
        %460 = vmatprep.subr.mxu0 0.0
        %461 = vmatpush1.msra.mxu0 %v317
        %462 = vmatprep.subr.mxu0 0.0
        %463 = vmatpush1.msra.mxu0 %v318
        %464 = vmatprep.subr.mxu0 0.0
        %465 = vmatpush1.msra.mxu0 %v319
        %466 = vmatprep.subr.mxu0 0.0
        %467 = vmatpush1.msra.mxu0 %v320
        %468 = vmatprep.subr.mxu0 0.0
        %469 = vmatpush1.msra.mxu0 %v321
        %470 = vmatprep.subr.mxu0 0.0
        %471 = vmatpush1.msra.mxu0 0.0
        %472 = vmatprep.subr.mxu0 0.0
        %473 = vmatpush1.msra.mxu0 0.0
        %474 = vmatprep.subr.mxu0 0.0
        %475 = vmatpush1.msra.mxu0 0.0
        %476 = vmatprep.subr.mxu0 0.0
        %477 = vmatpush1.msra.mxu0 0.0
        %478 = vmatprep.subr.mxu0 0.0
        %479 = vmatpush1.msra.mxu0 0.0
        %480 = vmatprep.subr.mxu0 0.0
        %481 = vmatpush1.msra.mxu0 0.0
        %482 = vmatprep.subr.mxu0 0.0
        %483 = vmatpush1.msra.mxu0 0.0
        %484 = vmatprep.subr.mxu0 0.0
        %485 = vmatpush1.msra.mxu0 0.0
        %486 = vmatprep.subr.mxu0 0.0
        %487 = vmatpush1.msra.mxu0 0.0
        %488 = vmatprep.subr.mxu0 0.0
        %489 = vmatpush1.msra.mxu0 0.0
        %490 = vmatprep.subr.mxu0 0.0
        %491 = vmatpush1.msra.mxu0 0.0
        %492 = vmatprep.subr.mxu0 0.0
        %493 = vmatpush1.msra.mxu0 0.0
        %494 = vmatprep.subr.mxu0 0.0
        %495 = vmatpush1.msra.mxu0 0.0
        %496 = vmatprep.subr.mxu0 0.0
        %497 = vmatpush1.msra.mxu0 0.0
        %498 = vmatprep.subr.mxu0 0.0
        %499 = vmatpush1.msra.mxu0 0.0
        %500 = vmatprep.subr.mxu0 0.0
        %501 = vmatpush1.msra.mxu0 0.0
        %502 = vmatprep.subr.mxu0 0.0
        %503 = vmatpush1.msra.mxu0 0.0
        %504 = vmatprep.subr.mxu0 0.0
        %505 = vmatpush1.msra.mxu0 0.0
        %506 = vmatprep.subr.mxu0 0.0
        %507 = vmatpush1.msra.mxu0 0.0
        %508 = vmatprep.subr.mxu0 0.0
        %509 = vmatpush1.msra.mxu0 0.0
        %510 = vmatprep.subr.mxu0 0.0
        %511 = vmatpush1.msra.mxu0 0.0
        %512 = vmatprep.subr.mxu0 0.0
        %513 = vmatpush1.msra.mxu0 0.0
        %514 = vmatprep.subr.mxu0 0.0
        %515 = vmatpush1.msra.mxu0 0.0
        %516 = vmatprep.subr.mxu0 0.0
        %517 = vmatpush1.msra.mxu0 0.0
        %518 = vmatprep.mubr.f32.mxu0 0.0
        %519 = vmatmul.mubr.f32.gmra.mrb[0].mxu0 %v323
        %v520 = vpop.f32.mrb[0].mxu0
        %v521 = vadd.f32 0.0, %v520
        %v522 = vpop.f32.mrb[0].mxu0
        %523 = vmatprep.mubr.f32.mxu0 0.0
        %524 = vmatmul.mubr.f32.gmra.mrb[0].mxu0 %v326
        %v525 = vpop.f32.mrb[0].mxu0
        %v526 = vadd.f32 0.0, %v525
        %v527 = vpop.f32.mrb[0].mxu0
        %528 = vmatprep.mubr.f32.mxu0 0.0
        %529 = vmatmul.mubr.f32.gmra.mrb[0].mxu0 %v329
        %v530 = vpop.f32.mrb[0].mxu0
        %v531 = vadd.f32 0.0, %v530
        %v532 = vpop.f32.mrb[0].mxu0
        %533 = vmatprep.mubr.f32.mxu0 0.0
        %534 = vmatmul.mubr.f32.gmra.mrb[0].mxu0 %v332
        %v535 = vpop.f32.mrb[0].mxu0
        %v536 = vadd.f32 0.0, %v535
        %v537 = vpop.f32.mrb[0].mxu0
        %538 = vmatprep.mubr.f32.mxu0 0.0
        %539 = vmatmul.mubr.f32.gmra.mrb[0].mxu0 %v335
        %v540 = vpop.f32.mrb[0].mxu0
        %v541 = vadd.f32 0.0, %v540
        %v542 = vpop.f32.mrb[0].mxu0
        %543 = vmatprep.mubr.f32.mxu0 0.0
        %544 = vmatmul.mubr.f32.gmra.mrb[0].mxu0 %v338
        %v545 = vpop.f32.mrb[0].mxu0
        %v546 = vadd.f32 0.0, %v545
        %v547 = vpop.f32.mrb[0].mxu0
        %548 = vmatprep.mubr.f32.mxu0 0.0
        %549 = vmatmul.mubr.f32.gmra.mrb[0].mxu0 %v341
        %v550 = vpop.f32.mrb[0].mxu0
        %v551 = vadd.f32 0.0, %v550
        %v552 = vpop.f32.mrb[0].mxu0
        %553 = vmatprep.mubr.f32.mxu0 0.0
        %554 = vmatmul.mubr.f32.gmra.mrb[0].mxu0 %v344
        %v555 = vpop.f32.mrb[0].mxu0
        %v556 = vadd.f32 0.0, %v555
        %v557 = vpop.f32.mrb[0].mxu0
        %558 = vmatprep.mubr.f32.mxu0 0.0
        %559 = vmatmul.mubr.f32.gmra.mrb[0].mxu0 %v347
        %v560 = vpop.f32.mrb[0].mxu0
        %v561 = vadd.f32 0.0, %v560
        %v562 = vpop.f32.mrb[0].mxu0
        %563 = vmatprep.mubr.f32.mxu0 0.0
        %564 = vmatmul.mubr.f32.gmra.mrb[0].mxu0 %v350
        %v565 = vpop.f32.mrb[0].mxu0
        %v566 = vadd.f32 0.0, %v565
        %v567 = vpop.f32.mrb[0].mxu0
        %568 = vmatprep.mubr.f32.mxu0 0.0
        %569 = vmatmul.mubr.f32.gmra.mrb[0].mxu0 %v353
        %v570 = vpop.f32.mrb[0].mxu0
        %v571 = vadd.f32 0.0, %v570
        %v572 = vpop.f32.mrb[0].mxu0
        %573 = vmatprep.mubr.f32.mxu0 0.0
        %574 = vmatmul.mubr.f32.gmra.mrb[0].mxu0 %v356
        %v575 = vpop.f32.mrb[0].mxu0
        %v576 = vadd.f32 0.0, %v575
        %v577 = vpop.f32.mrb[0].mxu0
        %578 = vmatprep.mubr.f32.mxu0 0.0
        %579 = vmatmul.mubr.f32.gmra.mrb[0].mxu0 %v359
        %v580 = vpop.f32.mrb[0].mxu0
        %v581 = vadd.f32 0.0, %v580
        %v582 = vpop.f32.mrb[0].mxu0
        %583 = vmatprep.mubr.f32.mxu0 0.0
        %584 = vmatmul.mubr.f32.gmra.mrb[0].mxu0 %v362
        %v585 = vpop.f32.mrb[0].mxu0
        %v586 = vadd.f32 0.0, %v585
        %v587 = vpop.f32.mrb[0].mxu0
        %588 = vmatprep.mubr.f32.mxu0 0.0
        %589 = vmatmul.mubr.f32.gmra.mrb[0].mxu0 %v365
        %v590 = vpop.f32.mrb[0].mxu0
        %v591 = vadd.f32 0.0, %v590
        %v592 = vpop.f32.mrb[0].mxu0
        %593 = vmatprep.mubr.f32.mxu0 0.0
        %594 = vmatmul.mubr.f32.gmra.mrb[0].mxu0 %v368
        %v595 = vpop.f32.mrb[0].mxu0
        %v596 = vadd.f32 0.0, %v595
        %v597 = vpop.f32.mrb[0].mxu0
        %598 = vmatprep.mubr.f32.mxu0 0.0
        %599 = vmatmul.mubr.f32.gmra.mrb[0].mxu0 %v371
        %v600 = vpop.f32.mrb[0].mxu0
        %v601 = vadd.f32 0.0, %v600
        %v602 = vpop.f32.mrb[0].mxu0
        %603 = vmatprep.mubr.f32.mxu0 0.0
        %604 = vmatmul.mubr.f32.gmra.mrb[0].mxu0 %v374
        %v605 = vpop.f32.mrb[0].mxu0
        %v606 = vadd.f32 0.0, %v605
        %v607 = vpop.f32.mrb[0].mxu0
        %608 = vmatprep.mubr.f32.mxu0 0.0
        %609 = vmatmul.mubr.f32.gmra.mrb[0].mxu0 %v377
        %v610 = vpop.f32.mrb[0].mxu0
        %v611 = vadd.f32 0.0, %v610
        %v612 = vpop.f32.mrb[0].mxu0
        %613 = vmatprep.mubr.f32.mxu0 0.0
        %614 = vmatmul.mubr.f32.gmra.mrb[0].mxu0 %v380
        %v615 = vpop.f32.mrb[0].mxu0
        %v616 = vadd.f32 0.0, %v615
        %v617 = vpop.f32.mrb[0].mxu0
        %618 = vmatprep.mubr.f32.mxu0 0.0
        %619 = vmatmul.mubr.f32.gmra.mrb[0].mxu0 %v383
        %v620 = vpop.f32.mrb[0].mxu0
        %v621 = vpop.f32.mrb[0].mxu0
        %622 = vmatprep.mubr.f32.mxu0 0.0
        %623 = vmatmul.mubr.f32.gmra.mrb[0].mxu0 %v386
        %v624 = vpop.f32.mrb[0].mxu0
        %v625 = vpop.f32.mrb[0].mxu0
        %626 = vmatprep.mubr.f32.mxu0 0.0
        %627 = vmatmul.mubr.f32.gmra.mrb[0].mxu0 %v389
        %v628 = vpop.f32.mrb[0].mxu0
        %v629 = vadd.f32 0.0, %v628
        %v630 = vpop.f32.mrb[0].mxu0
        %631 = vmatprep.mubr.f32.mxu0 0.0
        %632 = vmatmul.mubr.f32.gmra.mrb[0].mxu0 %v392
        %v633 = vpop.f32.mrb[0].mxu0
        %v634 = vadd.f32 0.0, %v633
        %v635 = vpop.f32.mrb[0].mxu0
        %636 = vmatprep.mubr.f32.mxu0 0.0
        %637 = vmatmul.mubr.f32.gmra.mrb[0].mxu0 %v395
        %v638 = vpop.f32.mrb[0].mxu0
        %v639 = vadd.f32 0.0, %v638
        %v640 = vpop.f32.mrb[0].mxu0
        %641 = vmatprep.mubr.f32.mxu0 0.0
        %642 = vmatmul.mubr.f32.gmra.mrb[0].mxu0 %v398
        %v643 = vpop.f32.mrb[0].mxu0
        %v644 = vadd.f32 0.0, %v643
        %v645 = vpop.f32.mrb[0].mxu0
        %646 = vmatprep.mubr.f32.mxu0 0.0
        %647 = vmatmul.mubr.f32.gmra.mrb[0].mxu0 %v401
        %v648 = vpop.f32.mrb[0].mxu0
        %v649 = vadd.f32 0.0, %v648
        %v650 = vpop.f32.mrb[0].mxu0
        %651 = vmatprep.mubr.f32.mxu0 0.0
        %652 = vmatmul.mubr.f32.gmra.mrb[0].mxu0 %v404
        %v653 = vpop.f32.mrb[0].mxu0
        %v654 = vadd.f32 0.0, %v653
        %v655 = vpop.f32.mrb[0].mxu0
        %656 = vmatprep.mubr.f32.mxu0 0.0
        %657 = vmatmul.mubr.f32.gmra.mrb[0].mxu0 %v407
        %v658 = vpop.f32.mrb[0].mxu0
        %v659 = vadd.f32 0.0, %v658
        %v660 = vpop.f32.mrb[0].mxu0
        %661 = vmatprep.mubr.f32.mxu0 0.0
        %662 = vmatmul.mubr.f32.gmra.mrb[0].mxu0 %v410
        %v663 = vpop.f32.mrb[0].mxu0
        %v664 = vadd.f32 0.0, %v663
        %v665 = vpop.f32.mrb[0].mxu0
        %666 = vmatprep.mubr.f32.mxu0 0.0
        %667 = vmatmul.mubr.f32.gmra.mrb[0].mxu0 %v413
        %v668 = vpop.f32.mrb[0].mxu0
        %v669 = vadd.f32 0.0, %v668
        %v670 = vpop.f32.mrb[0].mxu0
        %671 = vmatprep.mubr.f32.mxu0 0.0
        %672 = vmatmul.mubr.f32.gmra.mrb[0].mxu0 %v416
        %v673 = vpop.f32.mrb[0].mxu0
        %v674 = vadd.f32 0.0, %v673
        %v675 = vpop.f32.mrb[0].mxu0
        %676 = vmatprep.mubr.f32.mxu0 0.0
        %677 = vmatmul.mubr.f32.gmra.mrb[0].mxu0 %v419
        %v678 = vpop.f32.mrb[0].mxu0
        %v679 = vadd.f32 0.0, %v678
        %v680 = vpop.f32.mrb[0].mxu0
        %681 = vmatprep.mubr.f32.mxu0 0.0
        %682 = vmatmul.mubr.f32.gmra.mrb[0].mxu0 %v422
        %v683 = vpop.f32.mrb[0].mxu0
        %v684 = vadd.f32 0.0, %v683
        %v685 = vpop.f32.mrb[0].mxu0
        %686 = vmatprep.mubr.f32.mxu0 0.0
        %687 = vmatmul.mubr.f32.gmra.mrb[0].mxu0 %v425
        %v688 = vpop.f32.mrb[0].mxu0
        %v689 = vadd.f32 0.0, %v688
        %v690 = vpop.f32.mrb[0].mxu0
        %691 = vmatprep.mubr.f32.mxu0 0.0
        %692 = vmatmul.mubr.f32.gmra.mrb[0].mxu0 %v428
        %v693 = vpop.f32.mrb[0].mxu0
        %v694 = vadd.f32 0.0, %v693
        %v695 = vpop.f32.mrb[0].mxu0
        %696 = vmatprep.mubr.f32.mxu0 0.0
        %697 = vmatmul.mubr.f32.gmra.mrb[0].mxu0 %v431
        %v698 = vpop.f32.mrb[0].mxu0
        %v699 = vadd.f32 0.0, %v698
        %v700 = vpop.f32.mrb[0].mxu0
        %701 = vmatprep.mubr.f32.mxu0 0.0
        %702 = vmatmul.mubr.f32.gmra.mrb[0].mxu0 %v434
        %v703 = vpop.f32.mrb[0].mxu0
        %v704 = vadd.f32 0.0, %v703
        %v705 = vpop.f32.mrb[0].mxu0
        %706 = vmatprep.mubr.f32.mxu0 0.0
        %707 = vmatmul.mubr.f32.gmra.mrb[0].mxu0 %v437
        %v708 = vpop.f32.mrb[0].mxu0
        %v709 = vadd.f32 0.0, %v708
        %v710 = vpop.f32.mrb[0].mxu0
        %711 = vmatprep.mubr.f32.mxu0 0.0
        %712 = vmatmul.mubr.f32.gmra.mrb[0].mxu0 %v440
        %v713 = vpop.f32.mrb[0].mxu0
        %v714 = vadd.f32 0.0, %v713
        %v715 = vpop.f32.mrb[0].mxu0
        %716 = vmatprep.mubr.f32.mxu0 0.0
        %717 = vmatmul.mubr.f32.gmra.mrb[0].mxu0 %v443
        %v718 = vpop.f32.mrb[0].mxu0
        %v719 = vadd.f32 0.0, %v718
        %v720 = vpop.f32.mrb[0].mxu0
        %721 = vmatprep.mubr.f32.mxu0 0.0
        %722 = vmatmul.mubr.f32.gmra.mrb[0].mxu0 %v446
        %v723 = vpop.f32.mrb[0].mxu0
        %v724 = vadd.f32 0.0, %v723
        %v725 = vpop.f32.mrb[0].mxu0
        %726 = vmatprep.mubr.f32.mxu0 0.0
        %727 = vmatmul.mubr.f32.gmra.mrb[0].mxu0 %v449
        %v728 = vpop.f32.mrb[0].mxu0
        %v729 = vpop.f32.mrb[0].mxu0
        %730 = vmatprep.mubr.f32.mxu0 0.0
        %731 = vmatmul.mubr.f32.gmra.mrb[0].mxu0 %v452
        %v732 = vpop.f32.mrb[0].mxu0
        %v733 = vpop.f32.mrb[0].mxu0
        %734 = vdwg.mxu0
        %vm767 = vcmask 1046528
        %v768 = vrot.slane %v521, 1
        %v769 = vrot.slane %v526, 1
        %v770 = vsel %vm767, %v768, %v769
        %v771 = vrot.slane %v531, 1
        %v772 = vrot.slane %v536, 1
        %v773 = vsel %vm767, %v771, %v772
        %v774 = vrot.slane %v541, 1
        %v775 = vrot.slane %v546, 1
        %v776 = vsel %vm767, %v774, %v775
        %v777 = vrot.slane %v551, 1
        %v778 = vrot.slane %v556, 1
        %v779 = vsel %vm767, %v777, %v778
        %v780 = vrot.slane %v561, 1
        %v781 = vrot.slane %v566, 1
        %v782 = vsel %vm767, %v780, %v781
        %v783 = vrot.slane %v571, 1
        %v784 = vrot.slane %v576, 1
        %v785 = vsel %vm767, %v783, %v784
        %v786 = vrot.slane %v581, 1
        %v787 = vrot.slane %v586, 1
        %v788 = vsel %vm767, %v786, %v787
        %v789 = vrot.slane %v591, 1
        %v790 = vrot.slane %v596, 1
        %v791 = vsel %vm767, %v789, %v790
        %v792 = vrot.slane %v629, 1
        %v793 = vrot.slane %v634, 1
        %v794 = vsel %vm767, %v792, %v793
        %v795 = vrot.slane %v639, 1
        %v796 = vrot.slane %v644, 1
        %v797 = vsel %vm767, %v795, %v796
        %v798 = vrot.slane %v649, 1
        %v799 = vrot.slane %v654, 1
        %v800 = vsel %vm767, %v798, %v799
        %v801 = vrot.slane %v659, 1
        %v802 = vrot.slane %v664, 1
        %v803 = vsel %vm767, %v801, %v802
        %v804 = vrot.slane %v669, 1
        %v805 = vrot.slane %v674, 1
        %v806 = vsel %vm767, %v804, %v805
        %v807 = vrot.slane %v679, 1
        %v808 = vrot.slane %v684, 1
        %v809 = vsel %vm767, %v807, %v808
        %v810 = vrot.slane %v689, 1
        %v811 = vrot.slane %v694, 1
        %v812 = vsel %vm767, %v810, %v811
        %v813 = vrot.slane %v699, 1
        %v814 = vrot.slane %v704, 1
        %v815 = vsel %vm767, %v813, %v814
        %816 = vrot.lane.b32.xlu0 %v770, 125
        %v817 = vpop.permute.xlu0 %816
        %818 = vrot.lane.b32.xlu0 %v773, 125
        %v819 = vpop.permute.xlu0 %818
        %820 = vrot.lane.b32.xlu0 %v776, 125
        %v821 = vpop.permute.xlu0 %820
        %822 = vrot.lane.b32.xlu0 %v779, 125
        %v823 = vpop.permute.xlu0 %822
        %824 = vrot.lane.b32.xlu0 %v782, 125
        %v825 = vpop.permute.xlu0 %824
        %826 = vrot.lane.b32.xlu0 %v785, 125
        %v827 = vpop.permute.xlu0 %826
        %828 = vrot.lane.b32.xlu0 %v788, 125
        %v829 = vpop.permute.xlu0 %828
        %830 = vrot.lane.b32.xlu0 %v791, 125
        %v831 = vpop.permute.xlu0 %830
        %832 = vrot.lane.b32.xlu0 %v794, 125
        %v833 = vpop.permute.xlu0 %832
        %834 = vrot.lane.b32.xlu0 %v797, 125
        %v835 = vpop.permute.xlu0 %834
        %836 = vrot.lane.b32.xlu0 %v800, 125
        %v837 = vpop.permute.xlu0 %836
        %838 = vrot.lane.b32.xlu0 %v803, 125
        %v839 = vpop.permute.xlu0 %838
        %840 = vrot.lane.b32.xlu0 %v806, 125
        %v841 = vpop.permute.xlu0 %840
        %842 = vrot.lane.b32.xlu0 %v809, 125
        %v843 = vpop.permute.xlu0 %842
        %844 = vrot.lane.b32.xlu0 %v812, 125
        %v845 = vpop.permute.xlu0 %844
        %846 = vrot.lane.b32.xlu0 %v815, 125
        %v847 = vpop.permute.xlu0 %846
        %v864 = vadd.f32 %v521, %v817
        %v865 = vadd.f32 %v531, %v819
        %v866 = vadd.f32 %v541, %v821
        %v867 = vadd.f32 %v551, %v823
        %v868 = vadd.f32 %v561, %v825
        %v869 = vadd.f32 %v571, %v827
        %v870 = vadd.f32 %v581, %v829
        %v871 = vadd.f32 %v591, %v831
        %v872 = vadd.f32 %v629, %v833
        %v873 = vadd.f32 %v639, %v835
        %v874 = vadd.f32 %v649, %v837
        %v875 = vadd.f32 %v659, %v839
        %v876 = vadd.f32 %v669, %v841
        %v877 = vadd.f32 %v679, %v843
        %v878 = vadd.f32 %v689, %v845
        %v879 = vadd.f32 %v699, %v847
        %vm880 = vcmask 1045504
        %v881 = vrot.slane %v521, 2
        %v882 = vrot.slane %v526, 2
        %v883 = vsel %vm880, %v881, %v882
        %v884 = vrot.slane %v531, 2
        %v885 = vrot.slane %v536, 2
        %v886 = vsel %vm880, %v884, %v885
        %v887 = vrot.slane %v541, 2
        %v888 = vrot.slane %v546, 2
        %v889 = vsel %vm880, %v887, %v888
        %v890 = vrot.slane %v551, 2
        %v891 = vrot.slane %v556, 2
        %v892 = vsel %vm880, %v890, %v891
        %v893 = vrot.slane %v561, 2
        %v894 = vrot.slane %v566, 2
        %v895 = vsel %vm880, %v893, %v894
        %v896 = vrot.slane %v571, 2
        %v897 = vrot.slane %v576, 2
        %v898 = vsel %vm880, %v896, %v897
        %v899 = vrot.slane %v581, 2
        %v900 = vrot.slane %v586, 2
        %v901 = vsel %vm880, %v899, %v900
        %v902 = vrot.slane %v591, 2
        %v903 = vrot.slane %v596, 2
        %v904 = vsel %vm880, %v902, %v903
        %v905 = vrot.slane %v629, 2
        %v906 = vrot.slane %v634, 2
        %v907 = vsel %vm880, %v905, %v906
        %v908 = vrot.slane %v639, 2
        %v909 = vrot.slane %v644, 2
        %v910 = vsel %vm880, %v908, %v909
        %v911 = vrot.slane %v649, 2
        %v912 = vrot.slane %v654, 2
        %v913 = vsel %vm880, %v911, %v912
        %v914 = vrot.slane %v659, 2
        %v915 = vrot.slane %v664, 2
        %v916 = vsel %vm880, %v914, %v915
        %v917 = vrot.slane %v669, 2
        %v918 = vrot.slane %v674, 2
        %v919 = vsel %vm880, %v917, %v918
        %v920 = vrot.slane %v679, 2
        %v921 = vrot.slane %v684, 2
        %v922 = vsel %vm880, %v920, %v921
        %v923 = vrot.slane %v689, 2
        %v924 = vrot.slane %v694, 2
        %v925 = vsel %vm880, %v923, %v924
        %v926 = vrot.slane %v699, 2
        %v927 = vrot.slane %v704, 2
        %v928 = vsel %vm880, %v926, %v927
        %929 = vrot.lane.b32.xlu0 %v883, 122
        %v930 = vpop.permute.xlu0 %929
        %931 = vrot.lane.b32.xlu0 %v886, 122
        %v932 = vpop.permute.xlu0 %931
        %933 = vrot.lane.b32.xlu0 %v889, 122
        %v934 = vpop.permute.xlu0 %933
        %935 = vrot.lane.b32.xlu0 %v892, 122
        %v936 = vpop.permute.xlu0 %935
        %937 = vrot.lane.b32.xlu0 %v895, 122
        %v938 = vpop.permute.xlu0 %937
        %939 = vrot.lane.b32.xlu0 %v898, 122
        %v940 = vpop.permute.xlu0 %939
        %941 = vrot.lane.b32.xlu0 %v901, 122
        %v942 = vpop.permute.xlu0 %941
        %943 = vrot.lane.b32.xlu0 %v904, 122
        %v944 = vpop.permute.xlu0 %943
        %945 = vrot.lane.b32.xlu0 %v907, 122
        %v946 = vpop.permute.xlu0 %945
        %947 = vrot.lane.b32.xlu0 %v910, 122
        %v948 = vpop.permute.xlu0 %947
        %949 = vrot.lane.b32.xlu0 %v913, 122
        %v950 = vpop.permute.xlu0 %949
        %951 = vrot.lane.b32.xlu0 %v916, 122
        %v952 = vpop.permute.xlu0 %951
        %953 = vrot.lane.b32.xlu0 %v919, 122
        %v954 = vpop.permute.xlu0 %953
        %955 = vrot.lane.b32.xlu0 %v922, 122
        %v956 = vpop.permute.xlu0 %955
        %957 = vrot.lane.b32.xlu0 %v925, 122
        %v958 = vpop.permute.xlu0 %957
        %959 = vrot.lane.b32.xlu0 %v928, 122
        %v960 = vpop.permute.xlu0 %959
        %v977 = vadd.f32 %v864, %v930
        %v978 = vadd.f32 %v865, %v932
        %v979 = vadd.f32 %v866, %v934
        %v980 = vadd.f32 %v867, %v936
        %v981 = vadd.f32 %v868, %v938
        %v982 = vadd.f32 %v869, %v940
        %v983 = vadd.f32 %v870, %v942
        %v984 = vadd.f32 %v871, %v944
        %v985 = vadd.f32 %v872, %v946
        %v986 = vadd.f32 %v873, %v948
        %v987 = vadd.f32 %v874, %v950
        %v988 = vadd.f32 %v875, %v952
        %v989 = vadd.f32 %v876, %v954
        %v990 = vadd.f32 %v877, %v956
        %v991 = vadd.f32 %v878, %v958
        %v992 = vadd.f32 %v879, %v960
        %995 = vrot.lane.b32.xlu0 %v531, 119
        %v996 = vpop.permute.xlu0 %995
        %997 = vrot.lane.b32.xlu0 %v541, 119
        %v998 = vpop.permute.xlu0 %997
        %999 = vrot.lane.b32.xlu0 %v551, 119
        %v1000 = vpop.permute.xlu0 %999
        %1001 = vrot.lane.b32.xlu0 %v561, 119
        %v1002 = vpop.permute.xlu0 %1001
        %1003 = vrot.lane.b32.xlu0 %v571, 119
        %v1004 = vpop.permute.xlu0 %1003
        %1005 = vrot.lane.b32.xlu0 %v581, 119
        %v1006 = vpop.permute.xlu0 %1005
        %1007 = vrot.lane.b32.xlu0 %v591, 119
        %v1008 = vpop.permute.xlu0 %1007
        %1009 = vrot.lane.b32.xlu0 %v601, 119
        %v1010 = vpop.permute.xlu0 %1009
        %1011 = vrot.lane.b32.xlu0 %v639, 119
        %v1012 = vpop.permute.xlu0 %1011
        %1013 = vrot.lane.b32.xlu0 %v649, 119
        %v1014 = vpop.permute.xlu0 %1013
        %1015 = vrot.lane.b32.xlu0 %v659, 119
        %v1016 = vpop.permute.xlu0 %1015
        %1017 = vrot.lane.b32.xlu0 %v669, 119
        %v1018 = vpop.permute.xlu0 %1017
        %1019 = vrot.lane.b32.xlu0 %v679, 119
        %v1020 = vpop.permute.xlu0 %1019
        %1021 = vrot.lane.b32.xlu0 %v689, 119
        %v1022 = vpop.permute.xlu0 %1021
        %1023 = vrot.lane.b32.xlu0 %v699, 119
        %v1024 = vpop.permute.xlu0 %1023
        %1025 = vrot.lane.b32.xlu0 %v709, 119
        %v1026 = vpop.permute.xlu0 %1025
        %v1043 = vadd.f32 %v977, %v996
        %v1044 = vadd.f32 %v978, %v998
        %v1045 = vadd.f32 %v979, %v1000
        %v1046 = vadd.f32 %v980, %v1002
        %v1047 = vadd.f32 %v981, %v1004
        %v1048 = vadd.f32 %v982, %v1006
        %v1049 = vadd.f32 %v983, %v1008
        %v1050 = vadd.f32 %v984, %v1010
        %v1051 = vadd.f32 %v985, %v1012
        %v1052 = vadd.f32 %v986, %v1014
        %v1053 = vadd.f32 %v987, %v1016
        %v1054 = vadd.f32 %v988, %v1018
        %v1055 = vadd.f32 %v989, %v1020
        %v1056 = vadd.f32 %v990, %v1022
        %v1057 = vadd.f32 %v991, %v1024
        %v1058 = vadd.f32 %v992, %v1026
        %v1061 = vrot.slane %v601, 1
        %v1062 = vrot.slane %v606, 1
        %v1063 = vsel %vm767, %v1061, %v1062
        %v1064 = vrot.slane %v709, 1
        %v1065 = vrot.slane %v714, 1
        %v1066 = vsel %vm767, %v1064, %v1065
        %1067 = vrot.lane.b32.xlu0 %v773, 116
        %v1068 = vpop.permute.xlu0 %1067
        %1069 = vrot.lane.b32.xlu0 %v776, 116
        %v1070 = vpop.permute.xlu0 %1069
        %1071 = vrot.lane.b32.xlu0 %v779, 116
        %v1072 = vpop.permute.xlu0 %1071
        %1073 = vrot.lane.b32.xlu0 %v782, 116
        %v1074 = vpop.permute.xlu0 %1073
        %1075 = vrot.lane.b32.xlu0 %v785, 116
        %v1076 = vpop.permute.xlu0 %1075
        %1077 = vrot.lane.b32.xlu0 %v788, 116
        %v1078 = vpop.permute.xlu0 %1077
        %1079 = vrot.lane.b32.xlu0 %v791, 116
        %v1080 = vpop.permute.xlu0 %1079
        %1081 = vrot.lane.b32.xlu0 %v1063, 116
        %v1082 = vpop.permute.xlu0 %1081
        %1083 = vrot.lane.b32.xlu0 %v797, 116
        %v1084 = vpop.permute.xlu0 %1083
        %1085 = vrot.lane.b32.xlu0 %v800, 116
        %v1086 = vpop.permute.xlu0 %1085
        %1087 = vrot.lane.b32.xlu0 %v803, 116
        %v1088 = vpop.permute.xlu0 %1087
        %1089 = vrot.lane.b32.xlu0 %v806, 116
        %v1090 = vpop.permute.xlu0 %1089
        %1091 = vrot.lane.b32.xlu0 %v809, 116
        %v1092 = vpop.permute.xlu0 %1091
        %1093 = vrot.lane.b32.xlu0 %v812, 116
        %v1094 = vpop.permute.xlu0 %1093
        %1095 = vrot.lane.b32.xlu0 %v815, 116
        %v1096 = vpop.permute.xlu0 %1095
        %1097 = vrot.lane.b32.xlu0 %v1066, 116
        %v1098 = vpop.permute.xlu0 %1097
        %v1115 = vadd.f32 %v1043, %v1068
        %v1116 = vadd.f32 %v1044, %v1070
        %v1117 = vadd.f32 %v1045, %v1072
        %v1118 = vadd.f32 %v1046, %v1074
        %v1119 = vadd.f32 %v1047, %v1076
        %v1120 = vadd.f32 %v1048, %v1078
        %v1121 = vadd.f32 %v1049, %v1080
        %v1122 = vadd.f32 %v1050, %v1082
        %v1123 = vadd.f32 %v1051, %v1084
        %v1124 = vadd.f32 %v1052, %v1086
        %v1125 = vadd.f32 %v1053, %v1088
        %v1126 = vadd.f32 %v1054, %v1090
        %v1127 = vadd.f32 %v1055, %v1092
        %v1128 = vadd.f32 %v1056, %v1094
        %v1129 = vadd.f32 %v1057, %v1096
        %v1130 = vadd.f32 %v1058, %v1098
        %v1131 = vrot.slane %v601, 2
        %v1132 = vrot.slane %v606, 2
        %v1133 = vsel %vm880, %v1131, %v1132
        %v1134 = vrot.slane %v709, 2
        %v1135 = vrot.slane %v714, 2
        %v1136 = vsel %vm880, %v1134, %v1135
        %1137 = vrot.lane.b32.xlu0 %v886, 113
        %v1138 = vpop.permute.xlu0 %1137
        %1139 = vrot.lane.b32.xlu0 %v889, 113
        %v1140 = vpop.permute.xlu0 %1139
        %1141 = vrot.lane.b32.xlu0 %v892, 113
        %v1142 = vpop.permute.xlu0 %1141
        %1143 = vrot.lane.b32.xlu0 %v895, 113
        %v1144 = vpop.permute.xlu0 %1143
        %1145 = vrot.lane.b32.xlu0 %v898, 113
        %v1146 = vpop.permute.xlu0 %1145
        %1147 = vrot.lane.b32.xlu0 %v901, 113
        %v1148 = vpop.permute.xlu0 %1147
        %1149 = vrot.lane.b32.xlu0 %v904, 113
        %v1150 = vpop.permute.xlu0 %1149
        %1151 = vrot.lane.b32.xlu0 %v1133, 113
        %v1152 = vpop.permute.xlu0 %1151
        %1153 = vrot.lane.b32.xlu0 %v910, 113
        %v1154 = vpop.permute.xlu0 %1153
        %1155 = vrot.lane.b32.xlu0 %v913, 113
        %v1156 = vpop.permute.xlu0 %1155
        %1157 = vrot.lane.b32.xlu0 %v916, 113
        %v1158 = vpop.permute.xlu0 %1157
        %1159 = vrot.lane.b32.xlu0 %v919, 113
        %v1160 = vpop.permute.xlu0 %1159
        %1161 = vrot.lane.b32.xlu0 %v922, 113
        %v1162 = vpop.permute.xlu0 %1161
        %1163 = vrot.lane.b32.xlu0 %v925, 113
        %v1164 = vpop.permute.xlu0 %1163
        %1165 = vrot.lane.b32.xlu0 %v928, 113
        %v1166 = vpop.permute.xlu0 %1165
        %1167 = vrot.lane.b32.xlu0 %v1136, 113
        %v1168 = vpop.permute.xlu0 %1167
        %v1185 = vadd.f32 %v1115, %v1138
        %v1186 = vadd.f32 %v1116, %v1140
        %v1187 = vadd.f32 %v1117, %v1142
        %v1188 = vadd.f32 %v1118, %v1144
        %v1189 = vadd.f32 %v1119, %v1146
        %v1190 = vadd.f32 %v1120, %v1148
        %v1191 = vadd.f32 %v1121, %v1150
        %v1192 = vadd.f32 %v1122, %v1152
        %v1193 = vadd.f32 %v1123, %v1154
        %v1194 = vadd.f32 %v1124, %v1156
        %v1195 = vadd.f32 %v1125, %v1158
        %v1196 = vadd.f32 %v1126, %v1160
        %v1197 = vadd.f32 %v1127, %v1162
        %v1198 = vadd.f32 %v1128, %v1164
        %v1199 = vadd.f32 %v1129, %v1166
        %v1200 = vadd.f32 %v1130, %v1168
        %1203 = vrot.lane.b32.xlu0 %v541, 110
        %v1204 = vpop.permute.xlu0 %1203
        %1205 = vrot.lane.b32.xlu0 %v551, 110
        %v1206 = vpop.permute.xlu0 %1205
        %1207 = vrot.lane.b32.xlu0 %v561, 110
        %v1208 = vpop.permute.xlu0 %1207
        %1209 = vrot.lane.b32.xlu0 %v571, 110
        %v1210 = vpop.permute.xlu0 %1209
        %1211 = vrot.lane.b32.xlu0 %v581, 110
        %v1212 = vpop.permute.xlu0 %1211
        %1213 = vrot.lane.b32.xlu0 %v591, 110
        %v1214 = vpop.permute.xlu0 %1213
        %1215 = vrot.lane.b32.xlu0 %v601, 110
        %v1216 = vpop.permute.xlu0 %1215
        %1217 = vrot.lane.b32.xlu0 %v611, 110
        %v1218 = vpop.permute.xlu0 %1217
        %1219 = vrot.lane.b32.xlu0 %v649, 110
        %v1220 = vpop.permute.xlu0 %1219
        %1221 = vrot.lane.b32.xlu0 %v659, 110
        %v1222 = vpop.permute.xlu0 %1221
        %1223 = vrot.lane.b32.xlu0 %v669, 110
        %v1224 = vpop.permute.xlu0 %1223
        %1225 = vrot.lane.b32.xlu0 %v679, 110
        %v1226 = vpop.permute.xlu0 %1225
        %1227 = vrot.lane.b32.xlu0 %v689, 110
        %v1228 = vpop.permute.xlu0 %1227
        %1229 = vrot.lane.b32.xlu0 %v699, 110
        %v1230 = vpop.permute.xlu0 %1229
        %1231 = vrot.lane.b32.xlu0 %v709, 110
        %v1232 = vpop.permute.xlu0 %1231
        %1233 = vrot.lane.b32.xlu0 %v719, 110
        %v1234 = vpop.permute.xlu0 %1233
        %v1251 = vadd.f32 %v1185, %v1204
        %v1252 = vadd.f32 %v1186, %v1206
        %v1253 = vadd.f32 %v1187, %v1208
        %v1254 = vadd.f32 %v1188, %v1210
        %v1255 = vadd.f32 %v1189, %v1212
        %v1256 = vadd.f32 %v1190, %v1214
        %v1257 = vadd.f32 %v1191, %v1216
        %v1258 = vadd.f32 %v1192, %v1218
        %v1259 = vadd.f32 %v1193, %v1220
        %v1260 = vadd.f32 %v1194, %v1222
        %v1261 = vadd.f32 %v1195, %v1224
        %v1262 = vadd.f32 %v1196, %v1226
        %v1263 = vadd.f32 %v1197, %v1228
        %v1264 = vadd.f32 %v1198, %v1230
        %v1265 = vadd.f32 %v1199, %v1232
        %v1266 = vadd.f32 %v1200, %v1234
        %v1269 = vrot.slane %v611, 1
        %v1270 = vrot.slane %v616, 1
        %v1271 = vsel %vm767, %v1269, %v1270
        %v1272 = vrot.slane %v719, 1
        %v1273 = vrot.slane %v724, 1
        %v1274 = vsel %vm767, %v1272, %v1273
        %1275 = vrot.lane.b32.xlu0 %v776, 107
        %v1276 = vpop.permute.xlu0 %1275
        %1277 = vrot.lane.b32.xlu0 %v779, 107
        %v1278 = vpop.permute.xlu0 %1277
        %1279 = vrot.lane.b32.xlu0 %v782, 107
        %v1280 = vpop.permute.xlu0 %1279
        %1281 = vrot.lane.b32.xlu0 %v785, 107
        %v1282 = vpop.permute.xlu0 %1281
        %1283 = vrot.lane.b32.xlu0 %v788, 107
        %v1284 = vpop.permute.xlu0 %1283
        %1285 = vrot.lane.b32.xlu0 %v791, 107
        %v1286 = vpop.permute.xlu0 %1285
        %1287 = vrot.lane.b32.xlu0 %v1063, 107
        %v1288 = vpop.permute.xlu0 %1287
        %1289 = vrot.lane.b32.xlu0 %v1271, 107
        %v1290 = vpop.permute.xlu0 %1289
        %1291 = vrot.lane.b32.xlu0 %v800, 107
        %v1292 = vpop.permute.xlu0 %1291
        %1293 = vrot.lane.b32.xlu0 %v803, 107
        %v1294 = vpop.permute.xlu0 %1293
        %1295 = vrot.lane.b32.xlu0 %v806, 107
        %v1296 = vpop.permute.xlu0 %1295
        %1297 = vrot.lane.b32.xlu0 %v809, 107
        %v1298 = vpop.permute.xlu0 %1297
        %1299 = vrot.lane.b32.xlu0 %v812, 107
        %v1300 = vpop.permute.xlu0 %1299
        %1301 = vrot.lane.b32.xlu0 %v815, 107
        %v1302 = vpop.permute.xlu0 %1301
        %1303 = vrot.lane.b32.xlu0 %v1066, 107
        %v1304 = vpop.permute.xlu0 %1303
        %1305 = vrot.lane.b32.xlu0 %v1274, 107
        %v1306 = vpop.permute.xlu0 %1305
        %v1323 = vadd.f32 %v1251, %v1276
        %v1324 = vadd.f32 %v1252, %v1278
        %v1325 = vadd.f32 %v1253, %v1280
        %v1326 = vadd.f32 %v1254, %v1282
        %v1327 = vadd.f32 %v1255, %v1284
        %v1328 = vadd.f32 %v1256, %v1286
        %v1329 = vadd.f32 %v1257, %v1288
        %v1330 = vadd.f32 %v1258, %v1290
        %v1331 = vadd.f32 %v1259, %v1292
        %v1332 = vadd.f32 %v1260, %v1294
        %v1333 = vadd.f32 %v1261, %v1296
        %v1334 = vadd.f32 %v1262, %v1298
        %v1335 = vadd.f32 %v1263, %v1300
        %v1336 = vadd.f32 %v1264, %v1302
        %v1337 = vadd.f32 %v1265, %v1304
        %v1338 = vadd.f32 %v1266, %v1306
        %v1339 = vrot.slane %v611, 2
        %v1340 = vrot.slane %v616, 2
        %v1341 = vsel %vm880, %v1339, %v1340
        %v1342 = vrot.slane %v719, 2
        %v1343 = vrot.slane %v724, 2
        %v1344 = vsel %vm880, %v1342, %v1343
        %1345 = vrot.lane.b32.xlu0 %v889, 104
        %v1346 = vpop.permute.xlu0 %1345
        %1347 = vrot.lane.b32.xlu0 %v892, 104
        %v1348 = vpop.permute.xlu0 %1347
        %1349 = vrot.lane.b32.xlu0 %v895, 104
        %v1350 = vpop.permute.xlu0 %1349
        %1351 = vrot.lane.b32.xlu0 %v898, 104
        %v1352 = vpop.permute.xlu0 %1351
        %1353 = vrot.lane.b32.xlu0 %v901, 104
        %v1354 = vpop.permute.xlu0 %1353
        %1355 = vrot.lane.b32.xlu0 %v904, 104
        %v1356 = vpop.permute.xlu0 %1355
        %1357 = vrot.lane.b32.xlu0 %v1133, 104
        %v1358 = vpop.permute.xlu0 %1357
        %1359 = vrot.lane.b32.xlu0 %v1341, 104
        %v1360 = vpop.permute.xlu0 %1359
        %1361 = vrot.lane.b32.xlu0 %v913, 104
        %v1362 = vpop.permute.xlu0 %1361
        %1363 = vrot.lane.b32.xlu0 %v916, 104
        %v1364 = vpop.permute.xlu0 %1363
        %1365 = vrot.lane.b32.xlu0 %v919, 104
        %v1366 = vpop.permute.xlu0 %1365
        %1367 = vrot.lane.b32.xlu0 %v922, 104
        %v1368 = vpop.permute.xlu0 %1367
        %1369 = vrot.lane.b32.xlu0 %v925, 104
        %v1370 = vpop.permute.xlu0 %1369
        %1371 = vrot.lane.b32.xlu0 %v928, 104
        %v1372 = vpop.permute.xlu0 %1371
        %1373 = vrot.lane.b32.xlu0 %v1136, 104
        %v1374 = vpop.permute.xlu0 %1373
        %1375 = vrot.lane.b32.xlu0 %v1344, 104
        %v1376 = vpop.permute.xlu0 %1375
        %v1393 = vadd.f32 %v1323, %v1346
        %v1394 = vadd.f32 %v1324, %v1348
        %v1395 = vadd.f32 %v1325, %v1350
        %v1396 = vadd.f32 %v1326, %v1352
        %v1397 = vadd.f32 %v1327, %v1354
        %v1398 = vadd.f32 %v1328, %v1356
        %v1399 = vadd.f32 %v1329, %v1358
        %v1400 = vadd.f32 %v1330, %v1360
        %v1401 = vadd.f32 %v1331, %v1362
        %v1402 = vadd.f32 %v1332, %v1364
        %v1403 = vadd.f32 %v1333, %v1366
        %v1404 = vadd.f32 %v1334, %v1368
        %v1405 = vadd.f32 %v1335, %v1370
        %v1406 = vadd.f32 %v1336, %v1372
        %v1407 = vadd.f32 %v1337, %v1374
        %v1408 = vadd.f32 %v1338, %v1376
        %v1409 = vld [vmem:[%s2] sm:$0x1]
        %v1411 = vlaneseq
        %v1412 = vshrl.u32 %v1411, 7
        %v1413 = vsub.s32 0, %v1412
        %v1414 = vrot.slane %v1409, %v1413
        %v1416 = vadd.f32 %v1393, %v1414
        %v1417 = vadd.f32 %v1394, %v1414
        %v1418 = vadd.f32 %v1395, %v1414
        %v1419 = vadd.f32 %v1396, %v1414
        %v1420 = vadd.f32 %v1397, %v1414
        %v1421 = vadd.f32 %v1398, %v1414
        %v1422 = vadd.f32 %v1399, %v1414
        %v1423 = vadd.f32 %v1400, %v1414
        %v1424 = vadd.f32 %v1401, %v1414
        %v1425 = vadd.f32 %v1402, %v1414
        %v1426 = vadd.f32 %v1403, %v1414
        %v1427 = vadd.f32 %v1404, %v1414
        %v1428 = vadd.f32 %v1405, %v1414
        %v1429 = vadd.f32 %v1406, %v1414
        %v1430 = vadd.f32 %v1407, %v1414
        %v1431 = vadd.f32 %v1408, %v1414
        %1432 = vxpose.xlu0.b32.start [1/16] %v1416, 128
        %1433 = vxpose.xlu0.b32.cont [2/16] %v1417, 128
        %1434 = vxpose.xlu0.b32.cont [3/16] %v1418, 128
        %1435 = vxpose.xlu0.b32.cont [4/16] %v1419, 128
        %1436 = vxpose.xlu0.b32.cont [5/16] %v1420, 128
        %1437 = vxpose.xlu0.b32.cont [6/16] %v1421, 128
        %1438 = vxpose.xlu0.b32.cont [7/16] %v1422, 128
        %1439 = vxpose.xlu0.b32.cont [8/16] %v1423, 128
        %1440 = vxpose.xlu0.b32.cont [9/16] 0.0, 128
        %1441 = vxpose.xlu0.b32.cont [10/16] 0.0, 128
        %1442 = vxpose.xlu0.b32.cont [11/16] 0.0, 128
        %1443 = vxpose.xlu0.b32.cont [12/16] 0.0, 128
        %1444 = vxpose.xlu0.b32.cont [13/16] 0.0, 128
        %1445 = vxpose.xlu0.b32.cont [14/16] 0.0, 128
        %1446 = vxpose.xlu0.b32.cont [15/16] 0.0, 128
        %1447 = vxpose.xlu0.b32.end [16/16] 0.0, 128
        %v1448 = vpop.trf.xlu0
        %v1449 = vpop.trf.xlu0
        %v1450 = vpop.trf.xlu0
        %v1451 = vpop.trf.xlu0
        %v1452 = vpop.trf.xlu0
        %v1453 = vpop.trf.xlu0
        %v1454 = vpop.trf.xlu0
        %v1455 = vpop.trf.xlu0
        %v1456 = vpop.trf.xlu0
        %v1457 = vpop.trf.xlu0
        %v1458 = vpop.trf.xlu0
        %v1459 = vpop.trf.xlu0
        %v1460 = vpop.trf.xlu0
        %v1461 = vpop.trf.xlu0
        %v1462 = vpop.trf.xlu0
        %v1463 = vpop.trf.xlu0
        %1464 = vxpose.xlu0.b32.start [1/16] %v1424, 128
        %1465 = vxpose.xlu0.b32.cont [2/16] %v1425, 128
        %1466 = vxpose.xlu0.b32.cont [3/16] %v1426, 128
        %1467 = vxpose.xlu0.b32.cont [4/16] %v1427, 128
        %1468 = vxpose.xlu0.b32.cont [5/16] %v1428, 128
        %1469 = vxpose.xlu0.b32.cont [6/16] %v1429, 128
        %1470 = vxpose.xlu0.b32.cont [7/16] %v1430, 128
        %1471 = vxpose.xlu0.b32.cont [8/16] %v1431, 128
        %1472 = vxpose.xlu0.b32.cont [9/16] 0.0, 128
        %1473 = vxpose.xlu0.b32.cont [10/16] 0.0, 128
        %1474 = vxpose.xlu0.b32.cont [11/16] 0.0, 128
        %1475 = vxpose.xlu0.b32.cont [12/16] 0.0, 128
        %1476 = vxpose.xlu0.b32.cont [13/16] 0.0, 128
        %1477 = vxpose.xlu0.b32.cont [14/16] 0.0, 128
        %1478 = vxpose.xlu0.b32.cont [15/16] 0.0, 128
        %1479 = vxpose.xlu0.b32.end [16/16] 0.0, 128
        %v1480 = vpop.trf.xlu0
        %v1481 = vpop.trf.xlu0
        %v1482 = vpop.trf.xlu0
        %v1483 = vpop.trf.xlu0
        %v1484 = vpop.trf.xlu0
        %v1485 = vpop.trf.xlu0
        %v1486 = vpop.trf.xlu0
        %v1487 = vpop.trf.xlu0
        %v1488 = vpop.trf.xlu0
        %v1489 = vpop.trf.xlu0
        %v1490 = vpop.trf.xlu0
        %v1491 = vpop.trf.xlu0
        %v1492 = vpop.trf.xlu0
        %v1493 = vpop.trf.xlu0
        %v1494 = vpop.trf.xlu0
        %v1495 = vpop.trf.xlu0
        %v1497 = vunpack.c.l.s4 1983009808
        %v1498 = vunpack.c.0.s8 %v1497
        %v1499 = vlaneseq
        %v1500 = vshrl.u32 %v1499, 7
        %v1501 = vsub.s32 %v1498, %v1500
        %v1502 = vrot.slane %v1448, %v1501
        %v1504 = vunpack.c.l.s4 1934713408
        %v1505 = vunpack.c.0.s8 %v1504
        %v1506 = vlaneseq
        %v1507 = vshrl.u32 %v1506, 7
        %v1508 = vsub.s32 %v1505, %v1507
        %v1509 = vrot.slane %v1502, %v1508
        %v1510 = vcombine.high %v1509, 0.0
        %v1511 = vcombine.high %v1502, 0.0
        %v1513 = vunpack.c.l.s4 1983009808
        %v1514 = vunpack.c.0.s8 %v1513
        %v1515 = vlaneseq
        %v1516 = vshrl.u32 %v1515, 7
        %v1517 = vsub.s32 %v1514, %v1516
        %v1518 = vrot.slane %v1480, %v1517
        %v1520 = vunpack.c.l.s4 1934713408
        %v1521 = vunpack.c.0.s8 %v1520
        %v1522 = vlaneseq
        %v1523 = vshrl.u32 %v1522, 7
        %v1524 = vsub.s32 %v1521, %v1523
        %v1525 = vrot.slane %v1518, %v1524
        %v1526 = vcombine.high %v1525, 0.0
        %v1527 = vcombine.high %v1518, 0.0
        %1530 = vrot.lane.b32.xlu0 %v1510, 64
        %v1531 = vpop.permute.xlu0 %1530
        %1532 = vrot.lane.b32.xlu0 %v1526, 64
        %v1533 = vpop.permute.xlu0 %1532
        %v1536 = vsel %vm192, %v1509, %v1531
        %v1537 = vsel %vm192, %v1525, %v1533
        %v1542 = vcombine.low %v1536, %v1511
        %v1544 = vunpack.c.l.s4 1966171168
        %v1545 = vunpack.c.0.s8 %v1544
        %v1546 = vlaneseq
        %v1547 = vshrl.u32 %v1546, 7
        %v1548 = vsub.s32 %v1545, %v1547
        %v1549 = vrot.slane %v1542, %v1548
        %v1551 = vunpack.c.l.s4 1966171168
        %v1552 = vunpack.c.0.s8 %v1551
        %v1553 = vlaneseq
        %v1554 = vshrl.u32 %v1553, 7
        %v1555 = vsub.s32 %v1552, %v1554
        %v1556 = vrot.slane %v1549, %v1555
        %v1557 = vcombine.low %v1537, %v1527
        %v1559 = vunpack.c.l.s4 1966171168
        %v1560 = vunpack.c.0.s8 %v1559
        %v1561 = vlaneseq
        %v1562 = vshrl.u32 %v1561, 7
        %v1563 = vsub.s32 %v1560, %v1562
        %v1564 = vrot.slane %v1557, %v1563
        %v1566 = vunpack.c.l.s4 1966171168
        %v1567 = vunpack.c.0.s8 %v1566
        %v1568 = vlaneseq
        %v1569 = vshrl.u32 %v1568, 7
        %v1570 = vsub.s32 %v1567, %v1569
        %v1571 = vrot.slane %v1564, %v1570
        %v1574 = vlaneseq
        %vm1575 = vcmp.ge.s32.totalorder %v1574, 0
        %vm1576 = vcmp.lt.s32.totalorder %v1574, 192
        %vm1577 = vmand %vm1575, %vm1576
        %1578 = vst.msk [vmem:[%s189] sm:$0x3] %vm1577, %v1556
        %1579 = vst.msk [vmem:[%s189 + $0x2] sm:$0x3] %vm1577, %v1571
        %s1580 = sand.u32 %s96, 1
        %s1581 = scalar_lea.sflag [#allocation5], %s1580
        %s1582 = sand.u32 %s96, 1
        %s1583 = smul.addr %s1582, 4
        %s1584 = scalar_lea.vmem [#allocation6], %s1583
        // Predicated region
        $region37: #{tpu_custom_call.1} parent=31 // pred_check
          %p1585 = pneg %p106
        $region38: #{tpu_custom_call.1} parent=31 // pred_check_branch
          %1587 = sbr.rel (%p1585) target = $region40
        $region39: #{tpu_custom_call.1} parent=31 // pred_region
          %s1588 = smul.u32 2, %s20
          %s1590 = ssub.s32 64, 64
          %1591 = vsyncadd %s1581, %s1590
          %s1592 = smul.addr %s1588, 2
          %s1593 = smul.addr %s1592, 16
          %s1594 = scalar_lea.hbm %s3, %s1593
          %s1595 = sshll.u32 %s1584, 4
          %s1596 = int_to_ptr.vmem [resolvable:$true] %s1595
          %1601 = dma.vmem_to_hbm [thread:$0]  %s1596, 64, %s1594, %s1581, 32, 32, 2
        $region40: #{tpu_custom_call.1} parent=31 // pred_fallthru
          _
      $region32: #{tpu_custom_call.1} parent=5 // pred_fallthru
        _
      %p1602 = scmp.le.s32.totalorder 2, %s15
      // Predicated region
      $region41: #{tpu_custom_call.1} parent=5 // pred_check
        %p1603 = pneg %p1602
      $region42: #{tpu_custom_call.1} parent=5 // pred_check_branch
        %1605 = sbr.rel (%p1603) target = $region44
      $region43: #{tpu_custom_call.1} parent=5 // pred_region
        %s1606 = ssub.s32 %s15, 2
        // Predicated region
        $region45: #{tpu_custom_call.1} parent=43 // pred_check
          %p1607 = pneg %p112
        $region46: #{tpu_custom_call.1} parent=43 // pred_check_branch
          %1609 = sbr.rel (%p1607) target = $region48
        $region47: #{tpu_custom_call.1} parent=43 // pred_region
          %s1610 = sand.u32 %s97, 1
          %s1611 = scalar_lea.sflag [#allocation5], %s1610
          %s1612 = sand.u32 %s97, 1
          %s1613 = smul.addr %s1612, 4
          %s1614 = scalar_lea.vmem [#allocation6], %s1613
          %1615 = dma.done %s1611, 64
        $region48: #{tpu_custom_call.1} parent=43 // pred_fallthru
          _
      $region44: #{tpu_custom_call.1} parent=5 // pred_fallthru
        _
    $region6: #{tpu_custom_call.1} parent=1 // loop_footer
      %s19 = sadd.s32 1, %s15
    $region7: #{tpu_custom_call.1} parent=1 // loop_footer_branch
      %14 = sbr.rel target = $region3
    $region8: #{tpu_custom_call.1} parent=1 // loop_exit
      _
    %1616 = vsyncpa [#allocation4], 1
    %s1617 = scalar_lea.sflag [#allocation4], 1
    %1618 = vsyncpa %s1617, 1
    %1619 = vsyncpa [#allocation5], 1
    %s1620 = scalar_lea.sflag [#allocation5], 1
    %1621 = vsyncpa %s1620, 1

</llo_original>
